<compile_context>
chip_gen: v7x
topology: tpu7x:2x2x1
jax: 0.10.0
libtpu: 0.0.40
codegen_flags: <defaults>
</compile_context>

<pallas_src>
import functools

import jax
import jax.numpy as jnp
from jax.experimental import pallas as pl
from jax.experimental.pallas import tpu as pltpu


# ---------------------------------------------------------------------------
# Fused Pallas kernel
# ---------------------------------------------------------------------------

def make_fused_kernel(*, num_layers, N, T, H, neg_slope=0.2, eps=1e-5):
    NT = N * T

    def kernel(*refs):
        xrow_ref = refs[-1]          # VMEM scratch [N*T, D]: concatenated LN input rows
        out_ref = refs[-2]           # [N, T]
        it = iter(refs[:-2])

        def nxt():
            return next(it)[...]

        x = nxt()                    # [N, node_dim]            f32
        mask = nxt()                 # [N, N] (target, source)  f32, self-loops included
        onehot_nb = nxt()            # [N, B]                   f32
        pool_mat = nxt()             # [B, N] mean-pool weights f32

        # ---- GraphLatentEncoder: stacked dense GATv2 (concat=False -> head average) ----
        h = x
        for _ in range(num_layers):
            wlr = nxt()              # [in, 2*H*Do] bf16   (lin_l || lin_r)
            pk = nxt()               # [3H+1, Do]   f32    rows: bl(H) | br(H) | att(H) | bias(1)
            ge_ref = next(it)        # [H, N, N, Do] bf16  dense edge-attention term (kept as Ref)
            Do = pk.shape[1]
            HDo = H * Do

            glr = jnp.dot(h.astype(jnp.bfloat16), wlr,
                          preferred_element_type=jnp.float32)              # [N, 2*H*Do]

            acc = None
            for hh in range(H):
                gl_h = glr[:, hh * Do:(hh + 1) * Do] + pk[hh:hh + 1, :]                 # [N, Do] source / message
                gr_h = glr[:, HDo + hh * Do:HDo + (hh + 1) * Do] + pk[H + hh:H + hh + 1, :]  # [N, Do] target
                att_h = pk[2 * H + hh:2 * H + hh + 1, :]                                # [1, Do]
                ge_h = ge_ref[hh].astype(jnp.float32)                                   # [N, N, Do]

                # GATv2: e_ij = a_h . leaky_relu(W_l x_j + W_r x_i + W_e e_ij)
                t = gl_h[None, :, :] + gr_h[:, None, :] + ge_h             # [N_tgt, N_src, Do]
                t = jnp.where(t >= 0.0, t, neg_slope * t)
                s = jnp.sum(t * att_h[None, :, :], axis=-1)                # [N, N] sources on lanes

                # masked softmax over sources = lane-dense last-axis max / sum
                logits = jnp.where(mask > 0.0, s, -1e30)
                m = jnp.max(logits, axis=-1, keepdims=True)                # [N, 1]
                p = jnp.exp(logits - m)
                denom = jnp.sum(p, axis=-1, keepdims=True)                 # [N, 1]
                alpha = p * pl.reciprocal(jnp.maximum(denom, 1e-20), approx=True)

                # aggregation: one [N,N]x[N,Do] MXU matmul per head (bf16 in, f32 acc)
                msg = jnp.dot(alpha.astype(jnp.bfloat16), gl_h.astype(jnp.bfloat16),
                              preferred_element_type=jnp.float32)          # [N, Do]
                acc = msg if acc is None else acc + msg

            h = acc * (1.0 / H) + pk[3 * H:3 * H + 1, :]                   # head mean + bias
        node_emb = h                                                       # [N, latent]

        # ---- global mean pool per graph, gathered back per node: latent[batch[n]] ----
        lat = jnp.dot(pool_mat, node_emb, preferred_element_type=jnp.float32)    # [B, latent]
        lat_node = jnp.dot(onehot_nb, lat, preferred_element_type=jnp.float32)   # [N, latent]

        # ---- GraphNodeTimeSeriesEncoder: concat rows -> centered LayerNorm -> Linear -> ReLU ----
        gmt_rows = nxt()            # [N*T, 2*tp+1] f32  (gm_x | gm_y | t/T), row = n*T + t
        wg = nxt()                  # [D, hid] bf16      (LayerNorm gamma folded into W_enc)
        w_eff = nxt()               # [hid, hid] bf16    (LoRA folded: W0 + alpha/r * A@B)
        misc = nxt()                # [4, hid] f32       rows: beta@W+b_enc | b_llm | w_dec | b_dec
        hid = misc.shape[1]
        L = node_emb.shape[1]

        def over_time(v):           # [N, k] -> [N*T, k]  (row = n*T + t)
            k = v.shape[1]
            return jnp.broadcast_to(v[:, None, :], (N, T, k)).reshape(NT, k)

        # assemble the concatenated LayerNorm input in VMEM scratch
        xrow_ref[:, 0:L] = over_time(node_emb)
        xrow_ref[:, L:2 * L] = over_time(lat_node)
        xrow_ref[:, 2 * L:] = gmt_rows
        x_rows = xrow_ref[...]                                             # [N*T, D]

        mu = jnp.mean(x_rows, axis=-1, keepdims=True)
        xc = x_rows - mu
        var = jnp.mean(xc * xc, axis=-1, keepdims=True)                    # centered variance
        xn = xc * jax.lax.rsqrt(var + eps)
        z = jnp.dot(xn.astype(jnp.bfloat16), wg,
                    preferred_element_type=jnp.float32) + misc[0:1, :]
        embeds = jnp.maximum(z, 0.0)                                       # [N*T, hid]

        # ---- LoRA-folded LLM stand-in: gelu(x @ W_eff + b0) ----
        # TODO(synk): the real llM_QLoRA wraps a pretrained transformer
        # (load_LLM.LLM_PEFT); only the LoRA-adapted linear path is reproduced here,
        # no checkpoint is loaded.
        llm = jax.nn.gelu(jnp.dot(embeds.astype(jnp.bfloat16), w_eff,
                                  preferred_element_type=jnp.float32) + misc[1:2, :])

        # ---- NodeTimeSeriesDecoder fused: Linear(hid -> 1), emitted as a [N, T] tile ----
        # TODO(synk): at large N emit the transposed [T, N] tile for a lane-dense store.
        out_ref[...] = (jnp.sum(llm.reshape(N, T, hid) * misc[2:3, :][None, :, :], axis=-1)
                        + misc[3:4, 0:1])

    return kernel


# ---------------------------------------------------------------------------
# Parameter construction (deterministic, synthetic)
# ---------------------------------------------------------------------------

def init_params(key, node_dim, edge_dim, gnn_num_layers, head_num, gnn_hidden_dim,
                latent_dim, hidden_dim, lora_rank, time_patch):
    def nrm(k, shape, scale=0.1):
        return (scale * jax.random.normal(k, shape)).astype(jnp.float32)

    keys = jax.random.split(key, 64)
    kit = iter(keys)
    params = {"gnn": []}
    for i in range(gnn_num_layers):
        in_dim = node_dim if i == 0 else gnn_hidden_dim
        out_dim = latent_dim if i == gnn_num_layers - 1 else gnn_hidden_dim
        layer = {
            "wl": nrm(next(kit), (in_dim, head_num * out_dim)),
            "bl": nrm(next(kit), (1, head_num * out_dim)),
            "wr": nrm(next(kit), (in_dim, head_num * out_dim)),
            "br": nrm(next(kit), (1, head_num * out_dim)),
            "we": nrm(next(kit), (edge_dim, head_num * out_dim)),
            "att": nrm(next(kit), (head_num, out_dim)),
            "bias": nrm(next(kit), (1, out_dim)),
        }
        params["gnn"].append(layer)

    input_dim = 2 * latent_dim + 2 * time_patch + 1
    params["enc"] = {
        "gamma": jnp.ones((1, input_dim), jnp.float32),
        "beta": jnp.zeros((1, input_dim), jnp.float32),
        "w": nrm(next(kit), (input_dim, hidden_dim)),
        "b": nrm(next(kit), (1, hidden_dim)),
    }
    params["llm"] = {
        "w0": nrm(next(kit), (hidden_dim, hidden_dim)),
        "b0": nrm(next(kit), (1, hidden_dim)),
        "A": nrm(next(kit), (hidden_dim, lora_rank)),
        "B": nrm(next(kit), (lora_rank, hidden_dim)),
    }
    params["dec"] = {
        "w": nrm(next(kit), (hidden_dim, 1)),
        "b": nrm(next(kit), (1, 1)),
    }
    return params


# ---------------------------------------------------------------------------
# GraphLLM forward (wrapper: glue + structure arrays + single pallas_call)
# ---------------------------------------------------------------------------

def graph_llm_forward(params, x, edge_index, edge_attr, batch, ptr, ground_motions,
                      *, head_num, latent_dim, time_patch, output_time_length,
                      lora_alpha, lora_rank):
    N = x.shape[0]
    B = ptr.shape[0] - 1
    T = output_time_length
    tp = time_patch
    L = latent_dim
    H = head_num
    D = 2 * L + 2 * tp + 1
    NT = N * T
    edge_dim = edge_attr.shape[1]
    src, dst = edge_index[0], edge_index[1]

    # --- add self loops with fill_value='mean' (per-target mean of incoming attrs)
    sums = jnp.zeros((N, edge_dim), jnp.float32).at[dst].add(edge_attr)
    cnts = jnp.zeros((N, 1), jnp.float32).at[dst].add(1.0)
    self_attr = sums / jnp.maximum(cnts, 1.0)
    loop = jnp.arange(N, dtype=src.dtype)
    src_all = jnp.concatenate([src, loop])
    dst_all = jnp.concatenate([dst, loop])
    eattr_all = jnp.concatenate([edge_attr, self_attr], axis=0)

    # --- graph-structure arrays (O(N^2)/O(N*B); the O(N^3) rowsum/rowsum_t and the
    #     O(N*B*T^2) sel matrices of the previous version are eliminated).
    # TODO(synk): mask / onehot / pool / ge-scatter depend only on graph structure;
    # cache them across forward calls when the graph is static.
    mask = jnp.zeros((N, N), jnp.float32).at[dst_all, src_all].set(1.0)          # [target, source]
    onehot_nb = (batch[:, None] == jnp.arange(B)[None, :]).astype(jnp.float32)   # [N, B]
    counts = jnp.sum(onehot_nb, axis=0, keepdims=True)
    pool_mat = (onehot_nb / jnp.maximum(counts, 1.0)).T                          # [B, N]

    args = [x.astype(jnp.float32), mask, onehot_nb, pool_mat]

    flops = 0
    trans = 0
    # --- per GATv2 layer: packed bf16 weights + dense edge-attention term ---
    for layer in params["gnn"]:
        Do = layer["bias"].shape[1]
        HDo = H * Do
        in_dim = layer["wl"].shape[0]
        wlr = jnp.concatenate([layer["wl"], layer["wr"]], axis=1).astype(jnp.bfloat16)
        pk = jnp.concatenate([layer["bl"].reshape(H, Do), layer["br"].reshape(H, Do),
                              layer["att"], layer["bias"]], axis=0)               # [3H+1, Do]
        ge_edges = jnp.dot(eattr_all, layer["we"])                                # [E+N, H*Do]
        ge = (jnp.zeros((N, N, HDo), jnp.float32)
              .at[dst_all, src_all].set(ge_edges)
              .reshape(N, N, H, Do).transpose(2, 0, 1, 3)).astype(jnp.bfloat16)   # [H, N, N, Do]
        # TODO(synk): at large N stream ge per target-node tile via a grid BlockSpec
        # instead of keeping the full dense tensor resident.
        args += [wlr, pk, ge]
        flops += 2 * N * in_dim * 2 * HDo
        flops += H * (6 * N * N * Do + 10 * N * N)
        flops += H * 2 * N * N * Do
        trans += H * N * N

    # --- time-series encoder precompute: fold LayerNorm gamma into the encoder weight ---
    enc = params["enc"]
    hid = enc["w"].shape[1]
    wg = (enc["gamma"].reshape(D, 1) * enc["w"]).astype(jnp.bfloat16)             # [D, hid]
    bconst = jnp.dot(enc["beta"], enc["w"]) + enc["b"]                            # [1, hid]

    # --- LoRA folded into the frozen base weight (forward-exact) ---
    llm = params["llm"]
    scale = float(lora_alpha) / float(lora_rank)
    w_eff = (llm["w0"] + scale * jnp.dot(llm["A"], llm["B"])).astype(jnp.bfloat16)

    dec = params["dec"]
    misc = jnp.concatenate(
        [bconst, llm["b0"], dec["w"].T,
         jnp.full((1, hid), dec["b"][0, 0], dtype=jnp.float32)], axis=0)          # [4, hid]

    # --- per-(node,time) ground-motion + time features, gathered in the wrapper ---
    gm_rows = ground_motions[batch].reshape(NT, 2 * tp).astype(jnp.float32)
    t_col = jnp.broadcast_to((jnp.arange(T, dtype=jnp.float32) / float(T))[None, :],
                             (N, T)).reshape(NT, 1)
    gmt_rows = jnp.concatenate([gm_rows, t_col], axis=1)                          # [N*T, 2tp+1]

    args += [gmt_rows, wg, w_eff, misc]

    flops += 2 * B * N * L + 2 * N * B * L
    flops += 10 * NT * D + 2 * NT * D * hid
    flops += 2 * NT * hid * hid + 10 * NT * hid
    flops += 2 * NT * hid
    trans += NT * hid

    arg_bytes = sum(int(a.size) * a.dtype.itemsize for a in args)
    vmem_limit = int(min(64 * 2 ** 20, max(32 * 2 ** 20, 6 * arg_bytes)))

    kernel = make_fused_kernel(num_layers=len(params["gnn"]), N=N, T=T, H=H)
    out = pl.pallas_call(
        kernel,
        out_shape=jax.ShapeDtypeStruct((N, T), jnp.float32),
        in_specs=[pl.BlockSpec(memory_space=pltpu.MemorySpace.VMEM) for _ in args],
        out_specs=pl.BlockSpec(memory_space=pltpu.MemorySpace.VMEM),
        scratch_shapes=[pltpu.VMEM((NT, D), jnp.float32)],
        compiler_params=pltpu.CompilerParams(vmem_limit_bytes=vmem_limit),
        cost_estimate=pl.CostEstimate(flops=int(flops), transcendentals=int(trans),
                                      bytes_accessed=int(arg_bytes + NT * 4)),
        # TODO(synk): at large N add a target-node-tile grid (BlockSpec pipelining,
        # dimension_semantics=("parallel",)) so v7x's two TensorCores split the work.
    )(*args)
    return out[:, :, None]                                                        # [N, T, 1]


# ---------------------------------------------------------------------------
# Driver
# ---------------------------------------------------------------------------

if __name__ == "__main__":
    node_dim = 8
    edge_dim = 4
    gnn_num_layers = 2
    head_num = 2
    gnn_hidden_dim = 16
    latent_dim = 8
    GraphLLM_hidden_dim = 32
    LoRA_rank = 4
    LoRA_alpha = 8
    time_patch = 4
    output_time_length = 8

    B = 2
    nodes_per_graph = 4
    N = B * nodes_per_graph

    key = jax.random.PRNGKey(0)
    k_param, k_x, k_e, k_gm = jax.random.split(key, 4)

    params = init_params(k_param, node_dim, edge_dim, gnn_num_layers, head_num,
                         gnn_hidden_dim, latent_dim, GraphLLM_hidden_dim,
                         LoRA_rank, time_patch)

    # graph inputs: two ring graphs (bidirectional edges)
    src_list, dst_list = [], []
    for g in range(B):
        off = g * nodes_per_graph
        for i in range(nodes_per_graph):
            s = off + i
            d = off + (i + 1) % nodes_per_graph
            src_list += [s, d]
            dst_list += [d, s]
    edge_index = jnp.array([src_list, dst_list], dtype=jnp.int32)                 # [2, E]
    E = edge_index.shape[1]

    x = jax.random.normal(k_x, (N, node_dim), dtype=jnp.float32)
    edge_attr = jax.random.normal(k_e, (E, edge_dim), dtype=jnp.float32)
    batch = jnp.repeat(jnp.arange(B, dtype=jnp.int32), nodes_per_graph)
    ptr = jnp.array([0, nodes_per_graph, N], dtype=jnp.int32)
    ground_motions = jax.random.normal(
        k_gm, (B, output_time_length, 2 * time_patch), dtype=jnp.float32)

    fwd = jax.jit(functools.partial(
        graph_llm_forward,
        head_num=head_num, latent_dim=latent_dim, time_patch=time_patch,
        output_time_length=output_time_length,
        lora_alpha=LoRA_alpha, lora_rank=LoRA_rank))

    out = fwd(params, x, edge_index, edge_attr, batch, ptr, ground_motions)
    out = jax.block_until_ready(out)
    assert out.shape == (N, output_time_length, 1)
    assert bool(jnp.all(jnp.isfinite(out)))
    print("KERNEL_OK")
</pallas_src>

<mosaic_0001>
module attributes {stable_mosaic.version = 11 : i64} {
  func.func private @main(%arg0: i32) attributes {dimension_semantics = [#tpu.dimension_semantics<core_parallel>], iteration_bounds = array<i64: 2>, tpu.core_type = #tpu.core_type<sc_scalar_subcore>, window_params = []} {
    return
  }
}

module attributes {stable_mosaic.version = 11 : i64} {
  func.func private @main(%arg0: i32) attributes {dimension_semantics = [#tpu.dimension_semantics<core_parallel>], iteration_bounds = array<i64: 2>, tpu.core_type = #tpu.core_type<sc_scalar_subcore>, window_params = []} {
    return
  }
}

module attributes {stable_mosaic.version = 11 : i64} {
  func.func @kernel(%arg0: memref<8x8xf32, #tpu.memory_space<vmem>>, %arg1: memref<8x8xf32, #tpu.memory_space<vmem>>, %arg2: memref<8x2xf32, #tpu.memory_space<vmem>>, %arg3: memref<2x8xf32, #tpu.memory_space<vmem>>, %arg4: memref<8x64xbf16, #tpu.memory_space<vmem>>, %arg5: memref<7x16xf32, #tpu.memory_space<vmem>>, %arg6: memref<2x8x8x16xbf16, #tpu.memory_space<vmem>>, %arg7: memref<16x32xbf16, #tpu.memory_space<vmem>>, %arg8: memref<7x8xf32, #tpu.memory_space<vmem>>, %arg9: memref<2x8x8x8xbf16, #tpu.memory_space<vmem>>, %arg10: memref<64x9xf32, #tpu.memory_space<vmem>>, %arg11: memref<25x32xbf16, #tpu.memory_space<vmem>>, %arg12: memref<32x32xbf16, #tpu.memory_space<vmem>>, %arg13: memref<4x32xf32, #tpu.memory_space<vmem>>, %arg14: memref<8x8xf32, #tpu.memory_space<vmem>>, %arg15: memref<64x25xf32, #tpu.memory_space<vmem>>) attributes {dimension_semantics = [], scalar_prefetch = 0 : i64, scratch_operands = 1 : i64, tpu.core_type = #tpu.core_type<tc>} {
    %c0 = arith.constant 0 : index
    %c0_0 = arith.constant 0 : index
    %0 = vector.load %arg0[%c0, %c0_0] : memref<8x8xf32, #tpu.memory_space<vmem>>, vector<8x8xf32>
    %c0_1 = arith.constant 0 : index
    %c0_2 = arith.constant 0 : index
    %1 = vector.load %arg1[%c0_1, %c0_2] : memref<8x8xf32, #tpu.memory_space<vmem>>, vector<8x8xf32>
    %c0_3 = arith.constant 0 : index
    %c0_4 = arith.constant 0 : index
    %2 = vector.load %arg2[%c0_3, %c0_4] : memref<8x2xf32, #tpu.memory_space<vmem>>, vector<8x2xf32>
    %c0_5 = arith.constant 0 : index
    %c0_6 = arith.constant 0 : index
    %3 = vector.load %arg3[%c0_5, %c0_6] : memref<2x8xf32, #tpu.memory_space<vmem>>, vector<2x8xf32>
    %c0_7 = arith.constant 0 : index
    %c0_8 = arith.constant 0 : index
    %4 = vector.load %arg4[%c0_7, %c0_8] : memref<8x64xbf16, #tpu.memory_space<vmem>>, vector<8x64xbf16>
    %c0_9 = arith.constant 0 : index
    %c0_10 = arith.constant 0 : index
    %5 = vector.load %arg5[%c0_9, %c0_10] : memref<7x16xf32, #tpu.memory_space<vmem>>, vector<7x16xf32>
    %6 = arith.truncf %0 : vector<8x8xf32> to vector<8x8xbf16>
    %cst = arith.constant dense<0.000000e+00> : vector<8x64xf32>
    %7 = tpu.matmul %6, %4, %cst {dimension_numbers = #tpu.dot_dimension_numbers<[1], [0], [0], [1], [0, 0, 1, 1], [], []>} : vector<8x8xbf16>, vector<8x64xbf16>, vector<8x64xf32> -> vector<8x64xf32>
    %8 = vector.extract_strided_slice %7 {offsets = [0, 0], sizes = [8, 16], strides = [1, 1]} : vector<8x64xf32> to vector<8x16xf32>
    %9 = vector.extract_strided_slice %5 {offsets = [0, 0], sizes = [1, 16], strides = [1, 1]} : vector<7x16xf32> to vector<1x16xf32>
    %10 = vector.broadcast %9 : vector<1x16xf32> to vector<8x16xf32>
    %11 = arith.addf %8, %10 : vector<8x16xf32>
    %12 = vector.extract_strided_slice %7 {offsets = [0, 32], sizes = [8, 16], strides = [1, 1]} : vector<8x64xf32> to vector<8x16xf32>
    %13 = vector.extract_strided_slice %5 {offsets = [2, 0], sizes = [1, 16], strides = [1, 1]} : vector<7x16xf32> to vector<1x16xf32>
    %14 = vector.broadcast %13 : vector<1x16xf32> to vector<8x16xf32>
    %15 = arith.addf %12, %14 : vector<8x16xf32>
    %16 = vector.extract_strided_slice %5 {offsets = [4, 0], sizes = [1, 16], strides = [1, 1]} : vector<7x16xf32> to vector<1x16xf32>
    %c0_11 = arith.constant 0 : index
    %c0_12 = arith.constant 0 : index
    %c0_13 = arith.constant 0 : index
    %c0_14 = arith.constant 0 : index
    %17 = vector.load %arg6[%c0_11, %c0_12, %c0_13, %c0_14] : memref<2x8x8x16xbf16, #tpu.memory_space<vmem>>, vector<1x8x8x16xbf16>
    %18 = vector.shape_cast %17 : vector<1x8x8x16xbf16> to vector<8x8x16xbf16>
    %19 = arith.extf %18 : vector<8x8x16xbf16> to vector<8x8x16xf32>
    %20 = vector.shape_cast %11 : vector<8x16xf32> to vector<1x8x16xf32>
    %21 = vector.shape_cast %15 : vector<8x16xf32> to vector<8x1x16xf32>
    %22 = vector.broadcast %20 : vector<1x8x16xf32> to vector<8x8x16xf32>
    %23 = vector.broadcast %21 : vector<8x1x16xf32> to vector<8x8x16xf32>
    %24 = arith.addf %22, %23 : vector<8x8x16xf32>
    %25 = arith.addf %24, %19 : vector<8x8x16xf32>
    %cst_15 = arith.constant 0.000000e+00 : f32
    %26 = vector.broadcast %cst_15 : f32 to vector<8x8x16xf32>
    %27 = arith.cmpf oge, %25, %26 : vector<8x8x16xf32>
    %cst_16 = arith.constant 2.000000e-01 : f32
    %28 = vector.broadcast %cst_16 : f32 to vector<8x8x16xf32>
    %29 = arith.mulf %28, %25 : vector<8x8x16xf32>
    %30 = arith.select %27, %25, %29 : vector<8x8x16xi1>, vector<8x8x16xf32>
    %31 = vector.shape_cast %16 : vector<1x16xf32> to vector<1x1x16xf32>
    %32 = vector.broadcast %31 : vector<1x1x16xf32> to vector<8x8x16xf32>
    %33 = arith.mulf %30, %32 : vector<8x8x16xf32>
    %cst_17 = arith.constant dense<0.000000e+00> : vector<8x8xf32>
    %34 = vector.multi_reduction <add>, %33, %cst_17 [2] : vector<8x8x16xf32> to vector<8x8xf32>
    %cst_18 = arith.constant 0.000000e+00 : f32
    %35 = vector.broadcast %cst_18 : f32 to vector<8x8xf32>
    %36 = arith.cmpf ogt, %1, %35 : vector<8x8xf32>
    %cst_19 = arith.constant -1.000000e+30 : f32
    %37 = vector.broadcast %cst_19 : f32 to vector<8x8xf32>
    %38 = arith.select %36, %34, %37 : vector<8x8xi1>, vector<8x8xf32>
    %cst_20 = arith.constant dense<0xFF800000> : vector<8xf32>
    %39 = vector.multi_reduction <maximumf>, %38, %cst_20 [1] : vector<8x8xf32> to vector<8xf32>
    %40 = vector.shape_cast %39 : vector<8xf32> to vector<8x1xf32>
    %41 = vector.broadcast %40 : vector<8x1xf32> to vector<8x8xf32>
    %42 = arith.subf %38, %41 : vector<8x8xf32>
    %43 = math.exp %42 : vector<8x8xf32>
    %cst_21 = arith.constant dense<0.000000e+00> : vector<8xf32>
    %44 = vector.multi_reduction <add>, %43, %cst_21 [1] : vector<8x8xf32> to vector<8xf32>
    %45 = vector.shape_cast %44 : vector<8xf32> to vector<8x1xf32>
    %cst_22 = arith.constant 9.99999968E-21 : f32
    %46 = vector.broadcast %cst_22 : f32 to vector<8x1xf32>
    %47 = arith.maximumf %45, %46 : vector<8x1xf32>
    %48 = tpu.reciprocal %47 {approx = true} : vector<8x1xf32> -> vector<8x1xf32>
    %49 = vector.broadcast %48 : vector<8x1xf32> to vector<8x8xf32>
    %50 = arith.mulf %43, %49 : vector<8x8xf32>
    %51 = arith.truncf %50 : vector<8x8xf32> to vector<8x8xbf16>
    %52 = arith.truncf %11 : vector<8x16xf32> to vector<8x16xbf16>
    %cst_23 = arith.constant dense<0.000000e+00> : vector<8x16xf32>
    %53 = tpu.matmul %51, %52, %cst_23 {dimension_numbers = #tpu.dot_dimension_numbers<[1], [0], [0], [1], [0, 0, 1, 1], [], []>} : vector<8x8xbf16>, vector<8x16xbf16>, vector<8x16xf32> -> vector<8x16xf32>
    %54 = vector.extract_strided_slice %7 {offsets = [0, 16], sizes = [8, 16], strides = [1, 1]} : vector<8x64xf32> to vector<8x16xf32>
    %55 = vector.extract_strided_slice %5 {offsets = [1, 0], sizes = [1, 16], strides = [1, 1]} : vector<7x16xf32> to vector<1x16xf32>
    %56 = vector.broadcast %55 : vector<1x16xf32> to vector<8x16xf32>
    %57 = arith.addf %54, %56 : vector<8x16xf32>
    %58 = vector.extract_strided_slice %7 {offsets = [0, 48], sizes = [8, 16], strides = [1, 1]} : vector<8x64xf32> to vector<8x16xf32>
    %59 = vector.extract_strided_slice %5 {offsets = [3, 0], sizes = [1, 16], strides = [1, 1]} : vector<7x16xf32> to vector<1x16xf32>
    %60 = vector.broadcast %59 : vector<1x16xf32> to vector<8x16xf32>
    %61 = arith.addf %58, %60 : vector<8x16xf32>
    %62 = vector.extract_strided_slice %5 {offsets = [5, 0], sizes = [1, 16], strides = [1, 1]} : vector<7x16xf32> to vector<1x16xf32>
    %c1 = arith.constant 1 : index
    %c0_24 = arith.constant 0 : index
    %c0_25 = arith.constant 0 : index
    %c0_26 = arith.constant 0 : index
    %63 = vector.load %arg6[%c1, %c0_24, %c0_25, %c0_26] : memref<2x8x8x16xbf16, #tpu.memory_space<vmem>>, vector<1x8x8x16xbf16>
    %64 = vector.shape_cast %63 : vector<1x8x8x16xbf16> to vector<8x8x16xbf16>
    %65 = arith.extf %64 : vector<8x8x16xbf16> to vector<8x8x16xf32>
    %66 = vector.shape_cast %57 : vector<8x16xf32> to vector<1x8x16xf32>
    %67 = vector.shape_cast %61 : vector<8x16xf32> to vector<8x1x16xf32>
    %68 = vector.broadcast %66 : vector<1x8x16xf32> to vector<8x8x16xf32>
    %69 = vector.broadcast %67 : vector<8x1x16xf32> to vector<8x8x16xf32>
    %70 = arith.addf %68, %69 : vector<8x8x16xf32>
    %71 = arith.addf %70, %65 : vector<8x8x16xf32>
    %cst_27 = arith.constant 0.000000e+00 : f32
    %72 = vector.broadcast %cst_27 : f32 to vector<8x8x16xf32>
    %73 = arith.cmpf oge, %71, %72 : vector<8x8x16xf32>
    %cst_28 = arith.constant 2.000000e-01 : f32
    %74 = vector.broadcast %cst_28 : f32 to vector<8x8x16xf32>
    %75 = arith.mulf %74, %71 : vector<8x8x16xf32>
    %76 = arith.select %73, %71, %75 : vector<8x8x16xi1>, vector<8x8x16xf32>
    %77 = vector.shape_cast %62 : vector<1x16xf32> to vector<1x1x16xf32>
    %78 = vector.broadcast %77 : vector<1x1x16xf32> to vector<8x8x16xf32>
    %79 = arith.mulf %76, %78 : vector<8x8x16xf32>
    %cst_29 = arith.constant dense<0.000000e+00> : vector<8x8xf32>
    %80 = vector.multi_reduction <add>, %79, %cst_29 [2] : vector<8x8x16xf32> to vector<8x8xf32>
    %cst_30 = arith.constant 0.000000e+00 : f32
    %81 = vector.broadcast %cst_30 : f32 to vector<8x8xf32>
    %82 = arith.cmpf ogt, %1, %81 : vector<8x8xf32>
    %cst_31 = arith.constant -1.000000e+30 : f32
    %83 = vector.broadcast %cst_31 : f32 to vector<8x8xf32>
    %84 = arith.select %82, %80, %83 : vector<8x8xi1>, vector<8x8xf32>
    %cst_32 = arith.constant dense<0xFF800000> : vector<8xf32>
    %85 = vector.multi_reduction <maximumf>, %84, %cst_32 [1] : vector<8x8xf32> to vector<8xf32>
    %86 = vector.shape_cast %85 : vector<8xf32> to vector<8x1xf32>
    %87 = vector.broadcast %86 : vector<8x1xf32> to vector<8x8xf32>
    %88 = arith.subf %84, %87 : vector<8x8xf32>
    %89 = math.exp %88 : vector<8x8xf32>
    %cst_33 = arith.constant dense<0.000000e+00> : vector<8xf32>
    %90 = vector.multi_reduction <add>, %89, %cst_33 [1] : vector<8x8xf32> to vector<8xf32>
    %91 = vector.shape_cast %90 : vector<8xf32> to vector<8x1xf32>
    %cst_34 = arith.constant 9.99999968E-21 : f32
    %92 = vector.broadcast %cst_34 : f32 to vector<8x1xf32>
    %93 = arith.maximumf %91, %92 : vector<8x1xf32>
    %94 = tpu.reciprocal %93 {approx = true} : vector<8x1xf32> -> vector<8x1xf32>
    %95 = vector.broadcast %94 : vector<8x1xf32> to vector<8x8xf32>
    %96 = arith.mulf %89, %95 : vector<8x8xf32>
    %97 = arith.truncf %96 : vector<8x8xf32> to vector<8x8xbf16>
    %98 = arith.truncf %57 : vector<8x16xf32> to vector<8x16xbf16>
    %cst_35 = arith.constant dense<0.000000e+00> : vector<8x16xf32>
    %99 = tpu.matmul %97, %98, %cst_35 {dimension_numbers = #tpu.dot_dimension_numbers<[1], [0], [0], [1], [0, 0, 1, 1], [], []>} : vector<8x8xbf16>, vector<8x16xbf16>, vector<8x16xf32> -> vector<8x16xf32>
    %100 = arith.addf %53, %99 : vector<8x16xf32>
    %cst_36 = arith.constant 5.000000e-01 : f32
    %101 = vector.broadcast %cst_36 : f32 to vector<8x16xf32>
    %102 = arith.mulf %100, %101 : vector<8x16xf32>
    %103 = vector.extract_strided_slice %5 {offsets = [6, 0], sizes = [1, 16], strides = [1, 1]} : vector<7x16xf32> to vector<1x16xf32>
    %104 = vector.broadcast %103 : vector<1x16xf32> to vector<8x16xf32>
    %105 = arith.addf %102, %104 : vector<8x16xf32>
    %c0_37 = arith.constant 0 : index
    %c0_38 = arith.constant 0 : index
    %106 = vector.load %arg7[%c0_37, %c0_38] : memref<16x32xbf16, #tpu.memory_space<vmem>>, vector<16x32xbf16>
    %c0_39 = arith.constant 0 : index
    %c0_40 = arith.constant 0 : index
    %107 = vector.load %arg8[%c0_39, %c0_40] : memref<7x8xf32, #tpu.memory_space<vmem>>, vector<7x8xf32>
    %108 = arith.truncf %105 : vector<8x16xf32> to vector<8x16xbf16>
    %cst_41 = arith.constant dense<0.000000e+00> : vector<8x32xf32>
    %109 = tpu.matmul %108, %106, %cst_41 {dimension_numbers = #tpu.dot_dimension_numbers<[1], [0], [0], [1], [0, 0, 1, 1], [], []>} : vector<8x16xbf16>, vector<16x32xbf16>, vector<8x32xf32> -> vector<8x32xf32>
    %110 = vector.extract_strided_slice %109 {offsets = [0, 0], sizes = [8, 8], strides = [1, 1]} : vector<8x32xf32> to vector<8x8xf32>
    %111 = vector.extract_strided_slice %107 {offsets = [0, 0], sizes = [1, 8], strides = [1, 1]} : vector<7x8xf32> to vector<1x8xf32>
    %112 = vector.broadcast %111 : vector<1x8xf32> to vector<8x8xf32>
    %113 = arith.addf %110, %112 : vector<8x8xf32>
    %114 = vector.extract_strided_slice %109 {offsets = [0, 16], sizes = [8, 8], strides = [1, 1]} : vector<8x32xf32> to vector<8x8xf32>
    %115 = vector.extract_strided_slice %107 {offsets = [2, 0], sizes = [1, 8], strides = [1, 1]} : vector<7x8xf32> to vector<1x8xf32>
    %116 = vector.broadcast %115 : vector<1x8xf32> to vector<8x8xf32>
    %117 = arith.addf %114, %116 : vector<8x8xf32>
    %118 = vector.extract_strided_slice %107 {offsets = [4, 0], sizes = [1, 8], strides = [1, 1]} : vector<7x8xf32> to vector<1x8xf32>
    %c0_42 = arith.constant 0 : index
    %c0_43 = arith.constant 0 : index
    %c0_44 = arith.constant 0 : index
    %c0_45 = arith.constant 0 : index
    %119 = vector.load %arg9[%c0_42, %c0_43, %c0_44, %c0_45] : memref<2x8x8x8xbf16, #tpu.memory_space<vmem>>, vector<1x8x8x8xbf16>
    %120 = vector.shape_cast %119 : vector<1x8x8x8xbf16> to vector<8x8x8xbf16>
    %121 = arith.extf %120 : vector<8x8x8xbf16> to vector<8x8x8xf32>
    %122 = vector.shape_cast %113 : vector<8x8xf32> to vector<1x8x8xf32>
    %123 = vector.shape_cast %117 : vector<8x8xf32> to vector<8x1x8xf32>
    %124 = vector.broadcast %122 : vector<1x8x8xf32> to vector<8x8x8xf32>
    %125 = vector.broadcast %123 : vector<8x1x8xf32> to vector<8x8x8xf32>
    %126 = arith.addf %124, %125 : vector<8x8x8xf32>
    %127 = arith.addf %126, %121 : vector<8x8x8xf32>
    %cst_46 = arith.constant 0.000000e+00 : f32
    %128 = vector.broadcast %cst_46 : f32 to vector<8x8x8xf32>
    %129 = arith.cmpf oge, %127, %128 : vector<8x8x8xf32>
    %cst_47 = arith.constant 2.000000e-01 : f32
    %130 = vector.broadcast %cst_47 : f32 to vector<8x8x8xf32>
    %131 = arith.mulf %130, %127 : vector<8x8x8xf32>
    %132 = arith.select %129, %127, %131 : vector<8x8x8xi1>, vector<8x8x8xf32>
    %133 = vector.shape_cast %118 : vector<1x8xf32> to vector<1x1x8xf32>
    %134 = vector.broadcast %133 : vector<1x1x8xf32> to vector<8x8x8xf32>
    %135 = arith.mulf %132, %134 : vector<8x8x8xf32>
    %cst_48 = arith.constant dense<0.000000e+00> : vector<8x8xf32>
    %136 = vector.multi_reduction <add>, %135, %cst_48 [2] : vector<8x8x8xf32> to vector<8x8xf32>
    %cst_49 = arith.constant 0.000000e+00 : f32
    %137 = vector.broadcast %cst_49 : f32 to vector<8x8xf32>
    %138 = arith.cmpf ogt, %1, %137 : vector<8x8xf32>
    %cst_50 = arith.constant -1.000000e+30 : f32
    %139 = vector.broadcast %cst_50 : f32 to vector<8x8xf32>
    %140 = arith.select %138, %136, %139 : vector<8x8xi1>, vector<8x8xf32>
    %cst_51 = arith.constant dense<0xFF800000> : vector<8xf32>
    %141 = vector.multi_reduction <maximumf>, %140, %cst_51 [1] : vector<8x8xf32> to vector<8xf32>
    %142 = vector.shape_cast %141 : vector<8xf32> to vector<8x1xf32>
    %143 = vector.broadcast %142 : vector<8x1xf32> to vector<8x8xf32>
    %144 = arith.subf %140, %143 : vector<8x8xf32>
    %145 = math.exp %144 : vector<8x8xf32>
    %cst_52 = arith.constant dense<0.000000e+00> : vector<8xf32>
    %146 = vector.multi_reduction <add>, %145, %cst_52 [1] : vector<8x8xf32> to vector<8xf32>
    %147 = vector.shape_cast %146 : vector<8xf32> to vector<8x1xf32>
    %cst_53 = arith.constant 9.99999968E-21 : f32
    %148 = vector.broadcast %cst_53 : f32 to vector<8x1xf32>
    %149 = arith.maximumf %147, %148 : vector<8x1xf32>
    %150 = tpu.reciprocal %149 {approx = true} : vector<8x1xf32> -> vector<8x1xf32>
    %151 = vector.broadcast %150 : vector<8x1xf32> to vector<8x8xf32>
    %152 = arith.mulf %145, %151 : vector<8x8xf32>
    %153 = arith.truncf %152 : vector<8x8xf32> to vector<8x8xbf16>
    %154 = arith.truncf %113 : vector<8x8xf32> to vector<8x8xbf16>
    %cst_54 = arith.constant dense<0.000000e+00> : vector<8x8xf32>
    %155 = tpu.matmul %153, %154, %cst_54 {dimension_numbers = #tpu.dot_dimension_numbers<[1], [0], [0], [1], [0, 0, 1, 1], [], []>} : vector<8x8xbf16>, vector<8x8xbf16>, vector<8x8xf32> -> vector<8x8xf32>
    %156 = vector.extract_strided_slice %109 {offsets = [0, 8], sizes = [8, 8], strides = [1, 1]} : vector<8x32xf32> to vector<8x8xf32>
    %157 = vector.extract_strided_slice %107 {offsets = [1, 0], sizes = [1, 8], strides = [1, 1]} : vector<7x8xf32> to vector<1x8xf32>
    %158 = vector.broadcast %157 : vector<1x8xf32> to vector<8x8xf32>
    %159 = arith.addf %156, %158 : vector<8x8xf32>
    %160 = vector.extract_strided_slice %109 {offsets = [0, 24], sizes = [8, 8], strides = [1, 1]} : vector<8x32xf32> to vector<8x8xf32>
    %161 = vector.extract_strided_slice %107 {offsets = [3, 0], sizes = [1, 8], strides = [1, 1]} : vector<7x8xf32> to vector<1x8xf32>
    %162 = vector.broadcast %161 : vector<1x8xf32> to vector<8x8xf32>
    %163 = arith.addf %160, %162 : vector<8x8xf32>
    %164 = vector.extract_strided_slice %107 {offsets = [5, 0], sizes = [1, 8], strides = [1, 1]} : vector<7x8xf32> to vector<1x8xf32>
    %c1_55 = arith.constant 1 : index
    %c0_56 = arith.constant 0 : index
    %c0_57 = arith.constant 0 : index
    %c0_58 = arith.constant 0 : index
    %165 = vector.load %arg9[%c1_55, %c0_56, %c0_57, %c0_58] : memref<2x8x8x8xbf16, #tpu.memory_space<vmem>>, vector<1x8x8x8xbf16>
    %166 = vector.shape_cast %165 : vector<1x8x8x8xbf16> to vector<8x8x8xbf16>
    %167 = arith.extf %166 : vector<8x8x8xbf16> to vector<8x8x8xf32>
    %168 = vector.shape_cast %159 : vector<8x8xf32> to vector<1x8x8xf32>
    %169 = vector.shape_cast %163 : vector<8x8xf32> to vector<8x1x8xf32>
    %170 = vector.broadcast %168 : vector<1x8x8xf32> to vector<8x8x8xf32>
    %171 = vector.broadcast %169 : vector<8x1x8xf32> to vector<8x8x8xf32>
    %172 = arith.addf %170, %171 : vector<8x8x8xf32>
    %173 = arith.addf %172, %167 : vector<8x8x8xf32>
    %cst_59 = arith.constant 0.000000e+00 : f32
    %174 = vector.broadcast %cst_59 : f32 to vector<8x8x8xf32>
    %175 = arith.cmpf oge, %173, %174 : vector<8x8x8xf32>
    %cst_60 = arith.constant 2.000000e-01 : f32
    %176 = vector.broadcast %cst_60 : f32 to vector<8x8x8xf32>
    %177 = arith.mulf %176, %173 : vector<8x8x8xf32>
    %178 = arith.select %175, %173, %177 : vector<8x8x8xi1>, vector<8x8x8xf32>
    %179 = vector.shape_cast %164 : vector<1x8xf32> to vector<1x1x8xf32>
    %180 = vector.broadcast %179 : vector<1x1x8xf32> to vector<8x8x8xf32>
    %181 = arith.mulf %178, %180 : vector<8x8x8xf32>
    %cst_61 = arith.constant dense<0.000000e+00> : vector<8x8xf32>
    %182 = vector.multi_reduction <add>, %181, %cst_61 [2] : vector<8x8x8xf32> to vector<8x8xf32>
    %cst_62 = arith.constant 0.000000e+00 : f32
    %183 = vector.broadcast %cst_62 : f32 to vector<8x8xf32>
    %184 = arith.cmpf ogt, %1, %183 : vector<8x8xf32>
    %cst_63 = arith.constant -1.000000e+30 : f32
    %185 = vector.broadcast %cst_63 : f32 to vector<8x8xf32>
    %186 = arith.select %184, %182, %185 : vector<8x8xi1>, vector<8x8xf32>
    %cst_64 = arith.constant dense<0xFF800000> : vector<8xf32>
    %187 = vector.multi_reduction <maximumf>, %186, %cst_64 [1] : vector<8x8xf32> to vector<8xf32>
    %188 = vector.shape_cast %187 : vector<8xf32> to vector<8x1xf32>
    %189 = vector.broadcast %188 : vector<8x1xf32> to vector<8x8xf32>
    %190 = arith.subf %186, %189 : vector<8x8xf32>
    %191 = math.exp %190 : vector<8x8xf32>
    %cst_65 = arith.constant dense<0.000000e+00> : vector<8xf32>
    %192 = vector.multi_reduction <add>, %191, %cst_65 [1] : vector<8x8xf32> to vector<8xf32>
    %193 = vector.shape_cast %192 : vector<8xf32> to vector<8x1xf32>
    %cst_66 = arith.constant 9.99999968E-21 : f32
    %194 = vector.broadcast %cst_66 : f32 to vector<8x1xf32>
    %195 = arith.maximumf %193, %194 : vector<8x1xf32>
    %196 = tpu.reciprocal %195 {approx = true} : vector<8x1xf32> -> vector<8x1xf32>
    %197 = vector.broadcast %196 : vector<8x1xf32> to vector<8x8xf32>
    %198 = arith.mulf %191, %197 : vector<8x8xf32>
    %199 = arith.truncf %198 : vector<8x8xf32> to vector<8x8xbf16>
    %200 = arith.truncf %159 : vector<8x8xf32> to vector<8x8xbf16>
    %cst_67 = arith.constant dense<0.000000e+00> : vector<8x8xf32>
    %201 = tpu.matmul %199, %200, %cst_67 {dimension_numbers = #tpu.dot_dimension_numbers<[1], [0], [0], [1], [0, 0, 1, 1], [], []>} : vector<8x8xbf16>, vector<8x8xbf16>, vector<8x8xf32> -> vector<8x8xf32>
    %202 = arith.addf %155, %201 : vector<8x8xf32>
    %cst_68 = arith.constant 5.000000e-01 : f32
    %203 = vector.broadcast %cst_68 : f32 to vector<8x8xf32>
    %204 = arith.mulf %202, %203 : vector<8x8xf32>
    %205 = vector.extract_strided_slice %107 {offsets = [6, 0], sizes = [1, 8], strides = [1, 1]} : vector<7x8xf32> to vector<1x8xf32>
    %206 = vector.broadcast %205 : vector<1x8xf32> to vector<8x8xf32>
    %207 = arith.addf %204, %206 : vector<8x8xf32>
    %cst_69 = arith.constant dense<0.000000e+00> : vector<2x8xf32>
    %208 = tpu.matmul %3, %207, %cst_69 {dimension_numbers = #tpu.dot_dimension_numbers<[1], [0], [0], [1], [0, 0, 1, 1], [], []>} : vector<2x8xf32>, vector<8x8xf32>, vector<2x8xf32> -> vector<2x8xf32>
    %cst_70 = arith.constant dense<0.000000e+00> : vector<8x8xf32>
    %209 = tpu.matmul %2, %208, %cst_70 {dimension_numbers = #tpu.dot_dimension_numbers<[1], [0], [0], [1], [0, 0, 1, 1], [], []>} : vector<8x2xf32>, vector<2x8xf32>, vector<8x8xf32> -> vector<8x8xf32>
    %c0_71 = arith.constant 0 : index
    %c0_72 = arith.constant 0 : index
    %210 = vector.load %arg10[%c0_71, %c0_72] : memref<64x9xf32, #tpu.memory_space<vmem>>, vector<64x9xf32>
    %c0_73 = arith.constant 0 : index
    %c0_74 = arith.constant 0 : index
    %211 = vector.load %arg11[%c0_73, %c0_74] : memref<25x32xbf16, #tpu.memory_space<vmem>>, vector<25x32xbf16>
    %c0_75 = arith.constant 0 : index
    %c0_76 = arith.constant 0 : index
    %212 = vector.load %arg12[%c0_75, %c0_76] : memref<32x32xbf16, #tpu.memory_space<vmem>>, vector<32x32xbf16>
    %c0_77 = arith.constant 0 : index
    %c0_78 = arith.constant 0 : index
    %213 = vector.load %arg13[%c0_77, %c0_78] : memref<4x32xf32, #tpu.memory_space<vmem>>, vector<4x32xf32>
    %214 = vector.shape_cast %207 : vector<8x8xf32> to vector<8x1x8xf32>
    %215 = vector.shape_cast %214 : vector<8x1x8xf32> to vector<8x1x8xf32>
    %216 = vector.broadcast %215 : vector<8x1x8xf32> to vector<8x8x8xf32>
    %217 = vector.shape_cast %216 : vector<8x8x8xf32> to vector<64x8xf32>
    %c0_79 = arith.constant 0 : index
    %c0_80 = arith.constant 0 : index
    %218 = vector.load %arg15[%c0_79, %c0_80] : memref<64x25xf32, #tpu.memory_space<vmem>>, vector<64x8xf32>
    tpu.vector_store %arg15[%c0_79, %c0_80], %217 {strides = array<i32>} : memref<64x25xf32, #tpu.memory_space<vmem>>, vector<64x8xf32>,
    %219 = vector.shape_cast %209 : vector<8x8xf32> to vector<8x1x8xf32>
    %220 = vector.shape_cast %219 : vector<8x1x8xf32> to vector<8x1x8xf32>
    %221 = vector.broadcast %220 : vector<8x1x8xf32> to vector<8x8x8xf32>
    %222 = vector.shape_cast %221 : vector<8x8x8xf32> to vector<64x8xf32>
    %c0_81 = arith.constant 0 : index
    %c8 = arith.constant 8 : index
    %223 = vector.load %arg15[%c0_81, %c8] : memref<64x25xf32, #tpu.memory_space<vmem>>, vector<64x8xf32>
    tpu.vector_store %arg15[%c0_81, %c8], %222 {strides = array<i32>} : memref<64x25xf32, #tpu.memory_space<vmem>>, vector<64x8xf32>,
    %c0_82 = arith.constant 0 : index
    %c16 = arith.constant 16 : index
    %224 = vector.load %arg15[%c0_82, %c16] : memref<64x25xf32, #tpu.memory_space<vmem>>, vector<64x9xf32>
    tpu.vector_store %arg15[%c0_82, %c16], %210 {strides = array<i32>} : memref<64x25xf32, #tpu.memory_space<vmem>>, vector<64x9xf32>,
    %c0_83 = arith.constant 0 : index
    %c0_84 = arith.constant 0 : index
    %225 = vector.load %arg15[%c0_83, %c0_84] : memref<64x25xf32, #tpu.memory_space<vmem>>, vector<64x25xf32>
    %cst_85 = arith.constant dense<0.000000e+00> : vector<64xf32>
    %226 = vector.multi_reduction <add>, %225, %cst_85 [1] : vector<64x25xf32> to vector<64xf32>
    %227 = vector.shape_cast %226 : vector<64xf32> to vector<64x1xf32>
    %cst_86 = arith.constant 2.500000e+01 : f32
    %228 = vector.broadcast %cst_86 : f32 to vector<64x1xf32>
    %229 = arith.divf %227, %228 : vector<64x1xf32>
    %230 = vector.broadcast %229 : vector<64x1xf32> to vector<64x25xf32>
    %231 = arith.subf %225, %230 : vector<64x25xf32>
    %232 = arith.mulf %231, %231 : vector<64x25xf32>
    %cst_87 = arith.constant dense<0.000000e+00> : vector<64xf32>
    %233 = vector.multi_reduction <add>, %232, %cst_87 [1] : vector<64x25xf32> to vector<64xf32>
    %234 = vector.shape_cast %233 : vector<64xf32> to vector<64x1xf32>
    %cst_88 = arith.constant 2.500000e+01 : f32
    %235 = vector.broadcast %cst_88 : f32 to vector<64x1xf32>
    %236 = arith.divf %234, %235 : vector<64x1xf32>
    %cst_89 = arith.constant 9.99999974E-6 : f32
    %237 = vector.broadcast %cst_89 : f32 to vector<64x1xf32>
    %238 = arith.addf %236, %237 : vector<64x1xf32>
    %239 = math.rsqrt %238 : vector<64x1xf32>
    %240 = vector.broadcast %239 : vector<64x1xf32> to vector<64x25xf32>
    %241 = arith.mulf %231, %240 : vector<64x25xf32>
    %242 = arith.truncf %241 : vector<64x25xf32> to vector<64x25xbf16>
    %cst_90 = arith.constant dense<0.000000e+00> : vector<64x32xf32>
    %243 = tpu.matmul %242, %211, %cst_90 {dimension_numbers = #tpu.dot_dimension_numbers<[1], [0], [0], [1], [0, 0, 1, 1], [], []>} : vector<64x25xbf16>, vector<25x32xbf16>, vector<64x32xf32> -> vector<64x32xf32>
    %244 = vector.extract_strided_slice %213 {offsets = [0, 0], sizes = [1, 32], strides = [1, 1]} : vector<4x32xf32> to vector<1x32xf32>
    %245 = vector.broadcast %244 : vector<1x32xf32> to vector<64x32xf32>
    %246 = arith.addf %243, %245 : vector<64x32xf32>
    %cst_91 = arith.constant 0.000000e+00 : f32
    %247 = vector.broadcast %cst_91 : f32 to vector<64x32xf32>
    %248 = arith.maximumf %246, %247 : vector<64x32xf32>
    %249 = arith.truncf %248 : vector<64x32xf32> to vector<64x32xbf16>
    %cst_92 = arith.constant dense<0.000000e+00> : vector<64x32xf32>
    %250 = tpu.matmul %249, %212, %cst_92 {dimension_numbers = #tpu.dot_dimension_numbers<[1], [0], [0], [1], [0, 0, 1, 1], [], []>} : vector<64x32xbf16>, vector<32x32xbf16>, vector<64x32xf32> -> vector<64x32xf32>
    %251 = vector.extract_strided_slice %213 {offsets = [1, 0], sizes = [1, 32], strides = [1, 1]} : vector<4x32xf32> to vector<1x32xf32>
    %252 = vector.broadcast %251 : vector<1x32xf32> to vector<64x32xf32>
    %253 = arith.addf %250, %252 : vector<64x32xf32>
    %254 = arith.mulf %253, %253 : vector<64x32xf32>
    %255 = arith.mulf %253, %254 : vector<64x32xf32>
    %cst_93 = arith.constant 4.471500e-02 : f32
    %256 = vector.broadcast %cst_93 : f32 to vector<64x32xf32>
    %257 = arith.mulf %256, %255 : vector<64x32xf32>
    %258 = arith.addf %253, %257 : vector<64x32xf32>
    %cst_94 = arith.constant 0.797884583 : f32
    %259 = vector.broadcast %cst_94 : f32 to vector<64x32xf32>
    %260 = arith.mulf %259, %258 : vector<64x32xf32>
    %261 = math.tanh %260 : vector<64x32xf32>
    %cst_95 = arith.constant 1.000000e+00 : f32
    %262 = vector.broadcast %cst_95 : f32 to vector<64x32xf32>
    %263 = arith.addf %262, %261 : vector<64x32xf32>
    %cst_96 = arith.constant 5.000000e-01 : f32
    %264 = vector.broadcast %cst_96 : f32 to vector<64x32xf32>
    %265 = arith.mulf %264, %263 : vector<64x32xf32>
    %266 = arith.mulf %253, %265 : vector<64x32xf32>
    %267 = vector.shape_cast %266 : vector<64x32xf32> to vector<8x8x32xf32>
    %268 = vector.extract_strided_slice %213 {offsets = [2, 0], sizes = [1, 32], strides = [1, 1]} : vector<4x32xf32> to vector<1x32xf32>
    %269 = vector.shape_cast %268 : vector<1x32xf32> to vector<1x1x32xf32>
    %270 = vector.broadcast %269 : vector<1x1x32xf32> to vector<8x8x32xf32>
    %271 = arith.mulf %267, %270 : vector<8x8x32xf32>
    %cst_97 = arith.constant dense<0.000000e+00> : vector<8x8xf32>
    %272 = vector.multi_reduction <add>, %271, %cst_97 [2] : vector<8x8x32xf32> to vector<8x8xf32>
    %273 = vector.extract_strided_slice %213 {offsets = [3, 0], sizes = [1, 1], strides = [1, 1]} : vector<4x32xf32> to vector<1x1xf32>
    %274 = vector.broadcast %273 : vector<1x1xf32> to vector<8x8xf32>
    %275 = arith.addf %272, %274 : vector<8x8xf32>
    %c0_98 = arith.constant 0 : index
    %c0_99 = arith.constant 0 : index
    %276 = vector.load %arg14[%c0_98, %c0_99] : memref<8x8xf32, #tpu.memory_space<vmem>>, vector<8x8xf32>
    tpu.vector_store %arg14[%c0_98, %c0_99], %275 {strides = array<i32>} : memref<8x8xf32, #tpu.memory_space<vmem>>, vector<8x8xf32>,
    return
  }
}

</mosaic_0001>

<llo_original>
// kernel: graph_llm_forward.1
$region0: #{graph_llm_forward.1}
  #allocation0 [shape = 'u32[]', space=smem, size = 0x4, offset = 0x4, fixed_abs, tag = 'smem constant byte address 0x4 - core index']
  #allocation1 [shape = 'u32[144,128]{1,0:T(1,128)}', space=vmem, size = 0x12000, scoped, tag = 'internal scratch']
  #allocation2 [shape = 'f32[64,25]{1,0:T(8,128)}', space=vmem, size = 0x8000, scoped, tag = 'scratch operand']
  %s0 = inlined_call_operand.vmem [shape: f32[8,8], index: 0, kind: input, shape index: {}]
  %s1 = inlined_call_operand.vmem [shape: f32[8,8], index: 1, kind: input, shape index: {}]
  %s2 = inlined_call_operand.vmem [shape: f32[8,2], index: 2, kind: input, shape index: {}]
  %s3 = inlined_call_operand.vmem [shape: f32[2,8], index: 3, kind: input, shape index: {}]
  %s4 = inlined_call_operand.vmem [shape: bf16[8,64], index: 4, kind: input, shape index: {}]
  %s5 = inlined_call_operand.vmem [shape: f32[7,16], index: 5, kind: input, shape index: {}]
  %s6 = inlined_call_operand.vmem [shape: bf16[2,8,8,16], index: 6, kind: input, shape index: {}]
  %s7 = inlined_call_operand.vmem [shape: bf16[16,32], index: 7, kind: input, shape index: {}]
  %s8 = inlined_call_operand.vmem [shape: f32[7,8], index: 8, kind: input, shape index: {}]
  %s9 = inlined_call_operand.vmem [shape: bf16[2,8,8,8], index: 9, kind: input, shape index: {}]
  %s10 = inlined_call_operand.vmem [shape: f32[64,9], index: 10, kind: input, shape index: {}]
  %s11 = inlined_call_operand.vmem [shape: bf16[25,32], index: 11, kind: input, shape index: {}]
  %s12 = inlined_call_operand.vmem [shape: bf16[32,32], index: 12, kind: input, shape index: {}]
  %s13 = inlined_call_operand.vmem [shape: f32[4,32], index: 13, kind: input, shape index: {}]
  %s14 = inlined_call_operand.hbm [shape: f32[8,8], index: 14, kind: output, shape index: {}]
  %s15 = sld [smem:[#allocation0]]
  $region66: #{graph_llm_forward.1} parent=0
    _
  %s17 = ssub.s32 1, %s15
  %s18 = scalar_select 0, %s17, %s15
  $region1: #{graph_llm_forward.1} parent=0
    #allocation3 [shape = 'u8[4096]{0}', space=vmem, size = 0x1000, scoped, tag = 'output window, operand 0, single buffered']
    #allocation4 [shape = 's32[1]{0}', space=sflag, size = 0x4, scoped, tag = 'scoped memory for graph_llm_forward.1']
    %19 = vsyncpa [#allocation4], 0
    // Predicated region
    $region2: #{graph_llm_forward.1} parent=1 // pred_check
      _
    $region3: #{graph_llm_forward.1} parent=1 // pred_check_branch
      %21 = sbr.rel (0) target = $region5
    $region4: #{graph_llm_forward.1} parent=1 // pred_region
      _
    $region5: #{graph_llm_forward.1} parent=1 // pred_fallthru
      _
    // Predicated region
    $region6: #{graph_llm_forward.1} parent=1 // pred_check
      _
    $region7: #{graph_llm_forward.1} parent=1 // pred_check_branch
      %23 = sbr.rel (0) target = $region9
    $region8: #{graph_llm_forward.1} parent=1 // pred_region
      _
    $region9: #{graph_llm_forward.1} parent=1 // pred_fallthru
      _
    // Predicated region
    $region10: #{graph_llm_forward.1} parent=1 // pred_check
      _
    $region11: #{graph_llm_forward.1} parent=1 // pred_check_branch
      %25 = sbr.rel (0) target = $region13
    $region12: #{graph_llm_forward.1} parent=1 // pred_region
      _
    $region13: #{graph_llm_forward.1} parent=1 // pred_fallthru
      _
    // Predicated region
    $region14: #{graph_llm_forward.1} parent=1 // pred_check
      _
    $region15: #{graph_llm_forward.1} parent=1 // pred_check_branch
      %27 = sbr.rel (0) target = $region17
    $region16: #{graph_llm_forward.1} parent=1 // pred_region
      _
    $region17: #{graph_llm_forward.1} parent=1 // pred_fallthru
      _
    // Predicated region
    $region18: #{graph_llm_forward.1} parent=1 // pred_check
      _
    $region19: #{graph_llm_forward.1} parent=1 // pred_check_branch
      %29 = sbr.rel (0) target = $region21
    $region20: #{graph_llm_forward.1} parent=1 // pred_region
      _
    $region21: #{graph_llm_forward.1} parent=1 // pred_fallthru
      _
    // Predicated region
    $region22: #{graph_llm_forward.1} parent=1 // pred_check
      _
    $region23: #{graph_llm_forward.1} parent=1 // pred_check_branch
      %31 = sbr.rel (0) target = $region25
    $region24: #{graph_llm_forward.1} parent=1 // pred_region
      _
    $region25: #{graph_llm_forward.1} parent=1 // pred_fallthru
      _
    // Predicated region
    $region26: #{graph_llm_forward.1} parent=1 // pred_check
      _
    $region27: #{graph_llm_forward.1} parent=1 // pred_check_branch
      %33 = sbr.rel (0) target = $region29
    $region28: #{graph_llm_forward.1} parent=1 // pred_region
      _
    $region29: #{graph_llm_forward.1} parent=1 // pred_fallthru
      _
    // Predicated region
    $region30: #{graph_llm_forward.1} parent=1 // pred_check
      _
    $region31: #{graph_llm_forward.1} parent=1 // pred_check_branch
      %35 = sbr.rel (0) target = $region33
    $region32: #{graph_llm_forward.1} parent=1 // pred_region
      _
    $region33: #{graph_llm_forward.1} parent=1 // pred_fallthru
      _
    // Predicated region
    $region34: #{graph_llm_forward.1} parent=1 // pred_check
      _
    $region35: #{graph_llm_forward.1} parent=1 // pred_check_branch
      %37 = sbr.rel (0) target = $region37
    $region36: #{graph_llm_forward.1} parent=1 // pred_region
      _
    $region37: #{graph_llm_forward.1} parent=1 // pred_fallthru
      _
    // Predicated region
    $region38: #{graph_llm_forward.1} parent=1 // pred_check
      _
    $region39: #{graph_llm_forward.1} parent=1 // pred_check_branch
      %39 = sbr.rel (0) target = $region41
    $region40: #{graph_llm_forward.1} parent=1 // pred_region
      _
    $region41: #{graph_llm_forward.1} parent=1 // pred_fallthru
      _
    // Predicated region
    $region42: #{graph_llm_forward.1} parent=1 // pred_check
      _
    $region43: #{graph_llm_forward.1} parent=1 // pred_check_branch
      %41 = sbr.rel (0) target = $region45
    $region44: #{graph_llm_forward.1} parent=1 // pred_region
      _
    $region45: #{graph_llm_forward.1} parent=1 // pred_fallthru
      _
    // Predicated region
    $region46: #{graph_llm_forward.1} parent=1 // pred_check
      _
    $region47: #{graph_llm_forward.1} parent=1 // pred_check_branch
      %43 = sbr.rel (0) target = $region49
    $region48: #{graph_llm_forward.1} parent=1 // pred_region
      _
    $region49: #{graph_llm_forward.1} parent=1 // pred_fallthru
      _
    // Predicated region
    $region50: #{graph_llm_forward.1} parent=1 // pred_check
      _
    $region51: #{graph_llm_forward.1} parent=1 // pred_check_branch
      %45 = sbr.rel (0) target = $region53
    $region52: #{graph_llm_forward.1} parent=1 // pred_region
      _
    $region53: #{graph_llm_forward.1} parent=1 // pred_fallthru
      _
    // Predicated region
    $region54: #{graph_llm_forward.1} parent=1 // pred_check
      _
    $region55: #{graph_llm_forward.1} parent=1 // pred_check_branch
      %47 = sbr.rel (0) target = $region57
    $region56: #{graph_llm_forward.1} parent=1 // pred_region
      _
    $region57: #{graph_llm_forward.1} parent=1 // pred_fallthru
      _
    %v49 = vld [vmem:[%s0] sm:$0xff]
    %v50 = vld [vmem:[%s1] sm:$0xff]
    %v51 = vld [vmem:[%s2] sm:$0xff]
    %v52 = vld [vmem:[%s3] sm:$0x3]
    %v53 = vld [vmem:[%s4] sm:$0xf]
    %v54 = vld [vmem:[%s5] sm:$0x7f]
    %v55 = vpack.c.bf16 %v49, %v49
    %vm56 = vcmask 64512
    %v58 = vsel %vm56, %v55, 0
    %vm60 = vcmask 1043456
    %v62 = vsel %vm60, %v53, 0
    %64 = vmatprep.subr.bf16.mxu0 0
    %65 = vmatpush1.bf16.msra.mxu0 %v62
    %66 = vmatprep.subr.bf16.mxu0 0
    %67 = vmatpush1.bf16.msra.mxu0 0
    %68 = vmatprep.subr.bf16.mxu0 0
    %69 = vmatpush1.bf16.msra.mxu0 0
    %70 = vmatprep.subr.bf16.mxu0 0
    %71 = vmatpush1.bf16.msra.mxu0 0
    %72 = vmatprep.subr.bf16.mxu0 0
    %73 = vmatpush1.bf16.msra.mxu0 0
    %74 = vmatprep.subr.bf16.mxu0 0
    %75 = vmatpush1.bf16.msra.mxu0 0
    %76 = vmatprep.subr.bf16.mxu0 0
    %77 = vmatpush1.bf16.msra.mxu0 0
    %78 = vmatprep.subr.bf16.mxu0 0
    %79 = vmatpush1.bf16.msra.mxu0 0
    %80 = vmatprep.subr.bf16.mxu0 0
    %81 = vmatpush1.bf16.msra.mxu0 0
    %82 = vmatprep.subr.bf16.mxu0 0
    %83 = vmatpush1.bf16.msra.mxu0 0
    %84 = vmatprep.subr.bf16.mxu0 0
    %85 = vmatpush1.bf16.msra.mxu0 0
    %86 = vmatprep.subr.bf16.mxu0 0
    %87 = vmatpush1.bf16.msra.mxu0 0
    %88 = vmatprep.subr.bf16.mxu0 0
    %89 = vmatpush1.bf16.msra.mxu0 0
    %90 = vmatprep.subr.bf16.mxu0 0
    %91 = vmatpush1.bf16.msra.mxu0 0
    %92 = vmatprep.subr.bf16.mxu0 0
    %93 = vmatpush1.bf16.msra.mxu0 0
    %94 = vmatprep.subr.bf16.mxu0 0
    %95 = vmatpush1.bf16.msra.mxu0 0
    %96 = vmatprep.mubr.bf16.mxu0 0
    %97 = vmatmul.mubr.bf16.gmra.mrb[0].mxu0 %v58
    %v98 = vpop.f32.mrb[0].mxu0
    %v99 = vadd.f32 0.0, %v98
    %v100 = vpop.f32.mrb[0].mxu0
    %v101 = vpop.f32.mrb[0].mxu0
    %v102 = vpop.f32.mrb[0].mxu0
    %103 = vdwg.mxu0
    %v104 = vlaneseq
    %v105 = vshrl.u32 %v104, 7
    %v106 = vsub.s32 0, %v105
    %v107 = vrot.slane %v54, %v106
    %v108 = vadd.f32 %v99, %v107
    %v109 = vlaneseq
    %v110 = vshrl.u32 %v109, 7
    %v111 = vsub.s32 2, %v110
    %v112 = vrot.slane %v54, %v111
    %114 = vrot.lane.b32.xlu0 %v112, 32
    %v115 = vpop.permute.xlu0 %114
    %v117 = vadd.f32 %v99, %v115
    %v118 = vld [vmem:[%s6] sm:$0xf]
    %v119 = vld [vmem:[%s6 + $0x4] sm:$0xf]
    %v120 = vld [vmem:[%s6 + $0x8] sm:$0xf]
    %v121 = vld [vmem:[%s6 + $0xc] sm:$0xf]
    %v122 = vld [vmem:[%s6 + $0x10] sm:$0xf]
    %v123 = vld [vmem:[%s6 + $0x14] sm:$0xf]
    %v124 = vld [vmem:[%s6 + $0x18] sm:$0xf]
    %v125 = vld [vmem:[%s6 + $0x1c] sm:$0xf]
    %v126 = vunpack.c.l.bf16 %v118
    %v127 = vunpack.c.l.bf16 %v119
    %v128 = vunpack.c.l.bf16 %v120
    %v129 = vunpack.c.l.bf16 %v121
    %v130 = vunpack.c.l.bf16 %v122
    %v131 = vunpack.c.l.bf16 %v123
    %v132 = vunpack.c.l.bf16 %v124
    %v133 = vunpack.c.l.bf16 %v125
    %v135 = vcombine.high %v117, %v117
    %v137 = vunpack.c.l.s4 1966171168
    %v138 = vunpack.c.0.s8 %v137
    %v139 = vlaneseq
    %v140 = vshrl.u32 %v139, 7
    %v141 = vsub.s32 %v138, %v140
    %v142 = vrot.slane %v117, %v141
    %v144 = vunpack.c.l.s4 1966171168
    %v145 = vunpack.c.0.s8 %v144
    %v146 = vlaneseq
    %v147 = vshrl.u32 %v146, 7
    %v148 = vsub.s32 %v145, %v147
    %v149 = vrot.slane %v135, %v148
    %v150 = vcombine.high %v142, %v142
    %v151 = vcombine.high %v149, %v149
    %v153 = vunpack.c.l.s4 1966171168
    %v154 = vunpack.c.0.s8 %v153
    %v155 = vlaneseq
    %v156 = vshrl.u32 %v155, 7
    %v157 = vsub.s32 %v154, %v156
    %v158 = vrot.slane %v142, %v157
    %v160 = vunpack.c.l.s4 1966171168
    %v161 = vunpack.c.0.s8 %v160
    %v162 = vlaneseq
    %v163 = vshrl.u32 %v162, 7
    %v164 = vsub.s32 %v161, %v163
    %v165 = vrot.slane %v149, %v164
    %v167 = vunpack.c.l.s4 1966171168
    %v168 = vunpack.c.0.s8 %v167
    %v169 = vlaneseq
    %v170 = vshrl.u32 %v169, 7
    %v171 = vsub.s32 %v168, %v170
    %v172 = vrot.slane %v150, %v171
    %v174 = vunpack.c.l.s4 1966171168
    %v175 = vunpack.c.0.s8 %v174
    %v176 = vlaneseq
    %v177 = vshrl.u32 %v176, 7
    %v178 = vsub.s32 %v175, %v177
    %v179 = vrot.slane %v151, %v178
    %v180 = vcombine.high %v158, %v158
    %v181 = vcombine.high %v165, %v165
    %v182 = vcombine.high %v172, %v172
    %v183 = vcombine.high %v179, %v179
    %v184 = vlaneseq
    %v185 = vshrl.u32 %v184, 7
    %v186 = vsub.s32 0, %v185
    %v187 = vrot.slane %v158, %v186
    %v188 = vlaneseq
    %v189 = vshrl.u32 %v188, 7
    %v190 = vsub.s32 0, %v189
    %v191 = vrot.slane %v172, %v190
    %v192 = vlaneseq
    %v193 = vshrl.u32 %v192, 7
    %v194 = vsub.s32 0, %v193
    %v195 = vrot.slane %v180, %v194
    %v196 = vlaneseq
    %v197 = vshrl.u32 %v196, 7
    %v198 = vsub.s32 0, %v197
    %v199 = vrot.slane %v182, %v198
    %v200 = vlaneseq
    %v201 = vshrl.u32 %v200, 7
    %v202 = vsub.s32 0, %v201
    %v203 = vrot.slane %v165, %v202
    %v204 = vlaneseq
    %v205 = vshrl.u32 %v204, 7
    %v206 = vsub.s32 0, %v205
    %v207 = vrot.slane %v179, %v206
    %v208 = vlaneseq
    %v209 = vshrl.u32 %v208, 7
    %v210 = vsub.s32 0, %v209
    %v211 = vrot.slane %v181, %v210
    %v212 = vlaneseq
    %v213 = vshrl.u32 %v212, 7
    %v214 = vsub.s32 0, %v213
    %v215 = vrot.slane %v183, %v214
    %216 = vrot.lane.b32.xlu0 %v187, 96
    %v217 = vpop.permute.xlu0 %216
    %218 = vrot.lane.b32.xlu0 %v191, 96
    %v219 = vpop.permute.xlu0 %218
    %220 = vrot.lane.b32.xlu0 %v195, 96
    %v221 = vpop.permute.xlu0 %220
    %222 = vrot.lane.b32.xlu0 %v199, 96
    %v223 = vpop.permute.xlu0 %222
    %224 = vrot.lane.b32.xlu0 %v203, 96
    %v225 = vpop.permute.xlu0 %224
    %226 = vrot.lane.b32.xlu0 %v207, 96
    %v227 = vpop.permute.xlu0 %226
    %228 = vrot.lane.b32.xlu0 %v211, 96
    %v229 = vpop.permute.xlu0 %228
    %230 = vrot.lane.b32.xlu0 %v215, 96
    %v231 = vpop.permute.xlu0 %230
    %v240 = vadd.f32 %v108, %v217
    %v241 = vadd.f32 %v108, %v219
    %v242 = vadd.f32 %v108, %v221
    %v243 = vadd.f32 %v108, %v223
    %v244 = vadd.f32 %v108, %v225
    %v245 = vadd.f32 %v108, %v227
    %v246 = vadd.f32 %v108, %v229
    %v247 = vadd.f32 %v108, %v231
    %v248 = vadd.f32 %v240, %v126
    %v249 = vadd.f32 %v241, %v127
    %v250 = vadd.f32 %v242, %v128
    %v251 = vadd.f32 %v243, %v129
    %v252 = vadd.f32 %v244, %v130
    %v253 = vadd.f32 %v245, %v131
    %v254 = vadd.f32 %v246, %v132
    %v255 = vadd.f32 %v247, %v133
    %vm256 = vcmp.ge.f32.partialorder %v248, 0.0
    %vm257 = vcmp.ge.f32.partialorder %v249, 0.0
    %vm258 = vcmp.ge.f32.partialorder %v250, 0.0
    %vm259 = vcmp.ge.f32.partialorder %v251, 0.0
    %vm260 = vcmp.ge.f32.partialorder %v252, 0.0
    %vm261 = vcmp.ge.f32.partialorder %v253, 0.0
    %vm262 = vcmp.ge.f32.partialorder %v254, 0.0
    %vm263 = vcmp.ge.f32.partialorder %v255, 0.0
    %v264 = vmul.f32 %v248, 0.2
    %v265 = vmul.f32 %v249, 0.2
    %v266 = vmul.f32 %v250, 0.2
    %v267 = vmul.f32 %v251, 0.2
    %v268 = vmul.f32 %v252, 0.2
    %v269 = vmul.f32 %v253, 0.2
    %v270 = vmul.f32 %v254, 0.2
    %v271 = vmul.f32 %v255, 0.2
    %v272 = vsel %vm256, %v248, %v264
    %v273 = vsel %vm257, %v249, %v265
    %v274 = vsel %vm258, %v250, %v266
    %v275 = vsel %vm259, %v251, %v267
    %v276 = vsel %vm260, %v252, %v268
    %v277 = vsel %vm261, %v253, %v269
    %v278 = vsel %vm262, %v254, %v270
    %v279 = vsel %vm263, %v255, %v271
    %v280 = vlaneseq
    %v281 = vshrl.u32 %v280, 7
    %v282 = vsub.s32 4, %v281
    %v283 = vrot.slane %v54, %v282
    %v284 = vmul.f32 %v272, %v283
    %v285 = vmul.f32 %v273, %v283
    %v286 = vmul.f32 %v274, %v283
    %v287 = vmul.f32 %v275, %v283
    %v288 = vmul.f32 %v276, %v283
    %v289 = vmul.f32 %v277, %v283
    %v290 = vmul.f32 %v278, %v283
    %v291 = vmul.f32 %v279, %v283
    %vm292 = vcmask 130048
    %v293 = vsel %vm292, %v284, 0.0
    %294 = vadd.xlane.f32.xlu0 %v293
    %v295 = vpop.xlane.xlu0 %294
    %v296 = vsel %vm292, %v285, 0.0
    %297 = vadd.xlane.f32.xlu0 %v296
    %v298 = vpop.xlane.xlu0 %297
    %v299 = vsel %vm292, %v286, 0.0
    %300 = vadd.xlane.f32.xlu0 %v299
    %v301 = vpop.xlane.xlu0 %300
    %v302 = vsel %vm292, %v287, 0.0
    %303 = vadd.xlane.f32.xlu0 %v302
    %v304 = vpop.xlane.xlu0 %303
    %v305 = vsel %vm292, %v288, 0.0
    %306 = vadd.xlane.f32.xlu0 %v305
    %v307 = vpop.xlane.xlu0 %306
    %v308 = vsel %vm292, %v289, 0.0
    %309 = vadd.xlane.f32.xlu0 %v308
    %v310 = vpop.xlane.xlu0 %309
    %v311 = vsel %vm292, %v290, 0.0
    %312 = vadd.xlane.f32.xlu0 %v311
    %v313 = vpop.xlane.xlu0 %312
    %v314 = vsel %vm292, %v291, 0.0
    %315 = vadd.xlane.f32.xlu0 %v314
    %v316 = vpop.xlane.xlu0 %315
    %vm317 = vcmp.gt.f32.partialorder %v50, 0.0
    %v326 = vlaneseq
    %v327 = vand.u32 %v326, 127
    %v328 = vlaneseq
    %v329 = vshrl.u32 %v328, 7
    %v330 = vsub.s32 %v327, %v329
    %v331 = vrot.slane %v295, %v330
    %v332 = vlaneseq
    %v333 = vshrl.u32 %v332, 7
    %v334 = vsub.s32 %v327, %v333
    %v335 = vrot.slane %v298, %v334
    %v336 = vlaneseq
    %v337 = vshrl.u32 %v336, 7
    %v338 = vsub.s32 %v327, %v337
    %v339 = vrot.slane %v301, %v338
    %v340 = vlaneseq
    %v341 = vshrl.u32 %v340, 7
    %v342 = vsub.s32 %v327, %v341
    %v343 = vrot.slane %v304, %v342
    %v344 = vlaneseq
    %v345 = vshrl.u32 %v344, 7
    %v346 = vsub.s32 %v327, %v345
    %v347 = vrot.slane %v307, %v346
    %v348 = vlaneseq
    %v349 = vshrl.u32 %v348, 7
    %v350 = vsub.s32 %v327, %v349
    %v351 = vrot.slane %v310, %v350
    %v352 = vlaneseq
    %v353 = vshrl.u32 %v352, 7
    %v354 = vsub.s32 %v327, %v353
    %v355 = vrot.slane %v313, %v354
    %v356 = vlaneseq
    %v357 = vshrl.u32 %v356, 7
    %v358 = vsub.s32 %v327, %v357
    %v359 = vrot.slane %v316, %v358
    %vm360 = vcmask 1041409
    %v361 = vsel %vm360, %v335, %v331
    %vm362 = vcmask 1042434
    %v363 = vsel %vm362, %v339, %v361
    %vm364 = vcmask 1043459
    %v365 = vsel %vm364, %v343, %v363
    %vm366 = vcmask 1044484
    %v367 = vsel %vm366, %v347, %v365
    %vm368 = vcmask 1045509
    %v369 = vsel %vm368, %v351, %v367
    %vm370 = vcmask 1046534
    %v371 = vsel %vm370, %v355, %v369
    %vm372 = vcmask 1047559
    %v373 = vsel %vm372, %v359, %v371
    %v375 = vsel %vm317, %v373, -1e+30
    %v376 = vsel %vm56, %v375, -inf
    %377 = vmax.xlane.f32.xlu0 %v376
    %v378 = vpop.xlane.xlu0 %377
    %v379 = vsub.f32 %v375, %v378
    %v380 = vmul.f32 %v379, 1.442695
    %v381 = vpow.pop %v380
    %v382 = vsel %vm56, %v381, 0.0
    %383 = vadd.xlane.f32.xlu0 %v382
    %v384 = vpop.xlane.xlu0 %383
    %v385 = vmax.f32 %v384, 1e-20
    %v386 = vrcp.pop %v385
    %v387 = vmul.f32 %v381, %v386
    %v388 = vpack.c.bf16 %v387, %v387
    %v389 = vpack.c.bf16 %v108, %v108
    %v390 = vlaneseq
    %v391 = vshrl.u32 %v390, 7
    %v392 = vsub.s32 1, %v391
    %v393 = vrot.slane %v54, %v392
    %395 = vrot.lane.b32.xlu0 %v393, 16
    %v396 = vpop.permute.xlu0 %395
    %v398 = vadd.f32 %v99, %v396
    %v399 = vlaneseq
    %v400 = vshrl.u32 %v399, 7
    %v401 = vsub.s32 3, %v400
    %v402 = vrot.slane %v54, %v401
    %404 = vrot.lane.b32.xlu0 %v402, 48
    %v405 = vpop.permute.xlu0 %404
    %v407 = vadd.f32 %v99, %v405
    %s408 = scalar_lea.vmem %s6, 32
    %v409 = vld [vmem:[%s408] sm:$0xf]
    %v410 = vld [vmem:[%s408 + $0x4] sm:$0xf]
    %v411 = vld [vmem:[%s408 + $0x8] sm:$0xf]
    %v412 = vld [vmem:[%s408 + $0xc] sm:$0xf]
    %v413 = vld [vmem:[%s408 + $0x10] sm:$0xf]
    %v414 = vld [vmem:[%s408 + $0x14] sm:$0xf]
    %v415 = vld [vmem:[%s408 + $0x18] sm:$0xf]
    %v416 = vld [vmem:[%s408 + $0x1c] sm:$0xf]
    %v417 = vunpack.c.l.bf16 %v409
    %v418 = vunpack.c.l.bf16 %v410
    %v419 = vunpack.c.l.bf16 %v411
    %v420 = vunpack.c.l.bf16 %v412
    %v421 = vunpack.c.l.bf16 %v413
    %v422 = vunpack.c.l.bf16 %v414
    %v423 = vunpack.c.l.bf16 %v415
    %v424 = vunpack.c.l.bf16 %v416
    %v426 = vcombine.high %v407, %v407
    %v428 = vunpack.c.l.s4 1966171168
    %v429 = vunpack.c.0.s8 %v428
    %v430 = vlaneseq
    %v431 = vshrl.u32 %v430, 7
    %v432 = vsub.s32 %v429, %v431
    %v433 = vrot.slane %v407, %v432
    %v435 = vunpack.c.l.s4 1966171168
    %v436 = vunpack.c.0.s8 %v435
    %v437 = vlaneseq
    %v438 = vshrl.u32 %v437, 7
    %v439 = vsub.s32 %v436, %v438
    %v440 = vrot.slane %v426, %v439
    %v441 = vcombine.high %v433, %v433
    %v442 = vcombine.high %v440, %v440
    %v444 = vunpack.c.l.s4 1966171168
    %v445 = vunpack.c.0.s8 %v444
    %v446 = vlaneseq
    %v447 = vshrl.u32 %v446, 7
    %v448 = vsub.s32 %v445, %v447
    %v449 = vrot.slane %v433, %v448
    %v451 = vunpack.c.l.s4 1966171168
    %v452 = vunpack.c.0.s8 %v451
    %v453 = vlaneseq
    %v454 = vshrl.u32 %v453, 7
    %v455 = vsub.s32 %v452, %v454
    %v456 = vrot.slane %v440, %v455
    %v458 = vunpack.c.l.s4 1966171168
    %v459 = vunpack.c.0.s8 %v458
    %v460 = vlaneseq
    %v461 = vshrl.u32 %v460, 7
    %v462 = vsub.s32 %v459, %v461
    %v463 = vrot.slane %v441, %v462
    %v465 = vunpack.c.l.s4 1966171168
    %v466 = vunpack.c.0.s8 %v465
    %v467 = vlaneseq
    %v468 = vshrl.u32 %v467, 7
    %v469 = vsub.s32 %v466, %v468
    %v470 = vrot.slane %v442, %v469
    %v471 = vcombine.high %v449, %v449
    %v472 = vcombine.high %v456, %v456
    %v473 = vcombine.high %v463, %v463
    %v474 = vcombine.high %v470, %v470
    %v475 = vlaneseq
    %v476 = vshrl.u32 %v475, 7
    %v477 = vsub.s32 0, %v476
    %v478 = vrot.slane %v449, %v477
    %v479 = vlaneseq
    %v480 = vshrl.u32 %v479, 7
    %v481 = vsub.s32 0, %v480
    %v482 = vrot.slane %v463, %v481
    %v483 = vlaneseq
    %v484 = vshrl.u32 %v483, 7
    %v485 = vsub.s32 0, %v484
    %v486 = vrot.slane %v471, %v485
    %v487 = vlaneseq
    %v488 = vshrl.u32 %v487, 7
    %v489 = vsub.s32 0, %v488
    %v490 = vrot.slane %v473, %v489
    %v491 = vlaneseq
    %v492 = vshrl.u32 %v491, 7
    %v493 = vsub.s32 0, %v492
    %v494 = vrot.slane %v456, %v493
    %v495 = vlaneseq
    %v496 = vshrl.u32 %v495, 7
    %v497 = vsub.s32 0, %v496
    %v498 = vrot.slane %v470, %v497
    %v499 = vlaneseq
    %v500 = vshrl.u32 %v499, 7
    %v501 = vsub.s32 0, %v500
    %v502 = vrot.slane %v472, %v501
    %v503 = vlaneseq
    %v504 = vshrl.u32 %v503, 7
    %v505 = vsub.s32 0, %v504
    %v506 = vrot.slane %v474, %v505
    %507 = vrot.lane.b32.xlu0 %v478, 96
    %v508 = vpop.permute.xlu0 %507
    %509 = vrot.lane.b32.xlu0 %v482, 96
    %v510 = vpop.permute.xlu0 %509
    %511 = vrot.lane.b32.xlu0 %v486, 96
    %v512 = vpop.permute.xlu0 %511
    %513 = vrot.lane.b32.xlu0 %v490, 96
    %v514 = vpop.permute.xlu0 %513
    %515 = vrot.lane.b32.xlu0 %v494, 96
    %v516 = vpop.permute.xlu0 %515
    %517 = vrot.lane.b32.xlu0 %v498, 96
    %v518 = vpop.permute.xlu0 %517
    %519 = vrot.lane.b32.xlu0 %v502, 96
    %v520 = vpop.permute.xlu0 %519
    %521 = vrot.lane.b32.xlu0 %v506, 96
    %v522 = vpop.permute.xlu0 %521
    %v531 = vadd.f32 %v398, %v508
    %v532 = vadd.f32 %v398, %v510
    %v533 = vadd.f32 %v398, %v512
    %v534 = vadd.f32 %v398, %v514
    %v535 = vadd.f32 %v398, %v516
    %v536 = vadd.f32 %v398, %v518
    %v537 = vadd.f32 %v398, %v520
    %v538 = vadd.f32 %v398, %v522
    %547 = vrot.lane.b32.xlu0 %v417, 16
    %v548 = vpop.permute.xlu0 %547
    %549 = vrot.lane.b32.xlu0 %v418, 16
    %v550 = vpop.permute.xlu0 %549
    %551 = vrot.lane.b32.xlu0 %v419, 16
    %v552 = vpop.permute.xlu0 %551
    %553 = vrot.lane.b32.xlu0 %v420, 16
    %v554 = vpop.permute.xlu0 %553
    %555 = vrot.lane.b32.xlu0 %v421, 16
    %v556 = vpop.permute.xlu0 %555
    %557 = vrot.lane.b32.xlu0 %v422, 16
    %v558 = vpop.permute.xlu0 %557
    %559 = vrot.lane.b32.xlu0 %v423, 16
    %v560 = vpop.permute.xlu0 %559
    %561 = vrot.lane.b32.xlu0 %v424, 16
    %v562 = vpop.permute.xlu0 %561
    %v571 = vadd.f32 %v531, %v548
    %v572 = vadd.f32 %v532, %v550
    %v573 = vadd.f32 %v533, %v552
    %v574 = vadd.f32 %v534, %v554
    %v575 = vadd.f32 %v535, %v556
    %v576 = vadd.f32 %v536, %v558
    %v577 = vadd.f32 %v537, %v560
    %v578 = vadd.f32 %v538, %v562
    %vm579 = vcmp.ge.f32.partialorder %v571, 0.0
    %vm580 = vcmp.ge.f32.partialorder %v572, 0.0
    %vm581 = vcmp.ge.f32.partialorder %v573, 0.0
    %vm582 = vcmp.ge.f32.partialorder %v574, 0.0
    %vm583 = vcmp.ge.f32.partialorder %v575, 0.0
    %vm584 = vcmp.ge.f32.partialorder %v576, 0.0
    %vm585 = vcmp.ge.f32.partialorder %v577, 0.0
    %vm586 = vcmp.ge.f32.partialorder %v578, 0.0
    %v587 = vmul.f32 %v571, 0.2
    %v588 = vmul.f32 %v572, 0.2
    %v589 = vmul.f32 %v573, 0.2
    %v590 = vmul.f32 %v574, 0.2
    %v591 = vmul.f32 %v575, 0.2
    %v592 = vmul.f32 %v576, 0.2
    %v593 = vmul.f32 %v577, 0.2
    %v594 = vmul.f32 %v578, 0.2
    %v595 = vsel %vm579, %v571, %v587
    %v596 = vsel %vm580, %v572, %v588
    %v597 = vsel %vm581, %v573, %v589
    %v598 = vsel %vm582, %v574, %v590
    %v599 = vsel %vm583, %v575, %v591
    %v600 = vsel %vm584, %v576, %v592
    %v601 = vsel %vm585, %v577, %v593
    %v602 = vsel %vm586, %v578, %v594
    %v603 = vlaneseq
    %v604 = vshrl.u32 %v603, 7
    %v605 = vsub.s32 5, %v604
    %v606 = vrot.slane %v54, %v605
    %608 = vrot.lane.b32.xlu0 %v606, 16
    %v609 = vpop.permute.xlu0 %608
    %v611 = vmul.f32 %v595, %v609
    %v612 = vmul.f32 %v596, %v609
    %v613 = vmul.f32 %v597, %v609
    %v614 = vmul.f32 %v598, %v609
    %v615 = vmul.f32 %v599, %v609
    %v616 = vmul.f32 %v600, %v609
    %v617 = vmul.f32 %v601, %v609
    %v618 = vmul.f32 %v602, %v609
    %627 = vrot.lane.b32.xlu0 %v611, 112
    %v628 = vpop.permute.xlu0 %627
    %629 = vrot.lane.b32.xlu0 %v612, 112
    %v630 = vpop.permute.xlu0 %629
    %631 = vrot.lane.b32.xlu0 %v613, 112
    %v632 = vpop.permute.xlu0 %631
    %633 = vrot.lane.b32.xlu0 %v614, 112
    %v634 = vpop.permute.xlu0 %633
    %635 = vrot.lane.b32.xlu0 %v615, 112
    %v636 = vpop.permute.xlu0 %635
    %637 = vrot.lane.b32.xlu0 %v616, 112
    %v638 = vpop.permute.xlu0 %637
    %639 = vrot.lane.b32.xlu0 %v617, 112
    %v640 = vpop.permute.xlu0 %639
    %641 = vrot.lane.b32.xlu0 %v618, 112
    %v642 = vpop.permute.xlu0 %641
    %v651 = vsel %vm292, %v628, 0.0
    %652 = vadd.xlane.f32.xlu0 %v651
    %v653 = vpop.xlane.xlu0 %652
    %v654 = vsel %vm292, %v630, 0.0
    %655 = vadd.xlane.f32.xlu0 %v654
    %v656 = vpop.xlane.xlu0 %655
    %v657 = vsel %vm292, %v632, 0.0
    %658 = vadd.xlane.f32.xlu0 %v657
    %v659 = vpop.xlane.xlu0 %658
    %v660 = vsel %vm292, %v634, 0.0
    %661 = vadd.xlane.f32.xlu0 %v660
    %v662 = vpop.xlane.xlu0 %661
    %v663 = vsel %vm292, %v636, 0.0
    %664 = vadd.xlane.f32.xlu0 %v663
    %v665 = vpop.xlane.xlu0 %664
    %v666 = vsel %vm292, %v638, 0.0
    %667 = vadd.xlane.f32.xlu0 %v666
    %v668 = vpop.xlane.xlu0 %667
    %v669 = vsel %vm292, %v640, 0.0
    %670 = vadd.xlane.f32.xlu0 %v669
    %v671 = vpop.xlane.xlu0 %670
    %v672 = vsel %vm292, %v642, 0.0
    %673 = vadd.xlane.f32.xlu0 %v672
    %v674 = vpop.xlane.xlu0 %673
    %v683 = vlaneseq
    %v684 = vshrl.u32 %v683, 7
    %v685 = vsub.s32 %v327, %v684
    %v686 = vrot.slane %v653, %v685
    %v687 = vlaneseq
    %v688 = vshrl.u32 %v687, 7
    %v689 = vsub.s32 %v327, %v688
    %v690 = vrot.slane %v656, %v689
    %v691 = vlaneseq
    %v692 = vshrl.u32 %v691, 7
    %v693 = vsub.s32 %v327, %v692
    %v694 = vrot.slane %v659, %v693
    %v695 = vlaneseq
    %v696 = vshrl.u32 %v695, 7
    %v697 = vsub.s32 %v327, %v696
    %v698 = vrot.slane %v662, %v697
    %v699 = vlaneseq
    %v700 = vshrl.u32 %v699, 7
    %v701 = vsub.s32 %v327, %v700
    %v702 = vrot.slane %v665, %v701
    %v703 = vlaneseq
    %v704 = vshrl.u32 %v703, 7
    %v705 = vsub.s32 %v327, %v704
    %v706 = vrot.slane %v668, %v705
    %v707 = vlaneseq
    %v708 = vshrl.u32 %v707, 7
    %v709 = vsub.s32 %v327, %v708
    %v710 = vrot.slane %v671, %v709
    %v711 = vlaneseq
    %v712 = vshrl.u32 %v711, 7
    %v713 = vsub.s32 %v327, %v712
    %v714 = vrot.slane %v674, %v713
    %v715 = vsel %vm360, %v690, %v686
    %v716 = vsel %vm362, %v694, %v715
    %v717 = vsel %vm364, %v698, %v716
    %v718 = vsel %vm366, %v702, %v717
    %v719 = vsel %vm368, %v706, %v718
    %v720 = vsel %vm370, %v710, %v719
    %v721 = vsel %vm372, %v714, %v720
    %v723 = vsel %vm317, %v721, -1e+30
    %v724 = vsel %vm56, %v723, -inf
    %725 = vmax.xlane.f32.xlu0 %v724
    %v726 = vpop.xlane.xlu0 %725
    %v727 = vsub.f32 %v723, %v726
    %v728 = vmul.f32 %v727, 1.442695
    %v729 = vpow.pop %v728
    %v730 = vsel %vm56, %v729, 0.0
    %731 = vadd.xlane.f32.xlu0 %v730
    %v732 = vpop.xlane.xlu0 %731
    %v733 = vmax.f32 %v732, 1e-20
    %v734 = vrcp.pop %v733
    %v735 = vmul.f32 %v729, %v734
    %v736 = vpack.c.bf16 %v735, %v735
    %v737 = vpack.c.bf16 %v398, %v398
    %739 = vrot.lane.b32.xlu0 %v737, 112
    %v740 = vpop.permute.xlu0 %739
    %v742 = vsel %vm56, %v736, 0
    %v745 = vsel %vm60, %v740, 0
    %747 = vmatprep.subr.bf16.mxu0 0
    %748 = vmatpush1.bf16.msra.mxu0 %v745
    %749 = vmatprep.subr.bf16.mxu0 0
    %750 = vmatpush1.bf16.msra.mxu0 0
    %751 = vmatprep.subr.bf16.mxu0 0
    %752 = vmatpush1.bf16.msra.mxu0 0
    %753 = vmatprep.subr.bf16.mxu0 0
    %754 = vmatpush1.bf16.msra.mxu0 0
    %755 = vmatprep.subr.bf16.mxu0 0
    %756 = vmatpush1.bf16.msra.mxu0 0
    %757 = vmatprep.subr.bf16.mxu0 0
    %758 = vmatpush1.bf16.msra.mxu0 0
    %759 = vmatprep.subr.bf16.mxu0 0
    %760 = vmatpush1.bf16.msra.mxu0 0
    %761 = vmatprep.subr.bf16.mxu0 0
    %762 = vmatpush1.bf16.msra.mxu0 0
    %763 = vmatprep.subr.bf16.mxu0 0
    %764 = vmatpush1.bf16.msra.mxu0 0
    %765 = vmatprep.subr.bf16.mxu0 0
    %766 = vmatpush1.bf16.msra.mxu0 0
    %767 = vmatprep.subr.bf16.mxu0 0
    %768 = vmatpush1.bf16.msra.mxu0 0
    %769 = vmatprep.subr.bf16.mxu0 0
    %770 = vmatpush1.bf16.msra.mxu0 0
    %771 = vmatprep.subr.bf16.mxu0 0
    %772 = vmatpush1.bf16.msra.mxu0 0
    %773 = vmatprep.subr.bf16.mxu0 0
    %774 = vmatpush1.bf16.msra.mxu0 0
    %775 = vmatprep.subr.bf16.mxu0 0
    %776 = vmatpush1.bf16.msra.mxu0 0
    %777 = vmatprep.subr.bf16.mxu0 0
    %778 = vmatpush1.bf16.msra.mxu0 0
    %779 = vmatprep.mubr.bf16.mxu0 0
    %780 = vmatmul.mubr.bf16.gmra.mrb[0].mxu0 %v742
    %v781 = vpop.f32.mrb[0].mxu0
    %v782 = vadd.f32 0.0, %v781
    %v783 = vpop.f32.mrb[0].mxu0
    %v784 = vpop.f32.mrb[0].mxu0
    %v785 = vpop.f32.mrb[0].mxu0
    %786 = vdwg.mxu0
    %v788 = vsel %vm56, %v388, 0
    %v791 = vsel %vm60, %v389, 0
    %793 = vmatprep.subr.bf16.mxu0 0
    %794 = vmatpush1.bf16.msra.mxu0 %v791
    %795 = vmatprep.subr.bf16.mxu0 0
    %796 = vmatpush1.bf16.msra.mxu0 0
    %797 = vmatprep.subr.bf16.mxu0 0
    %798 = vmatpush1.bf16.msra.mxu0 0
    %799 = vmatprep.subr.bf16.mxu0 0
    %800 = vmatpush1.bf16.msra.mxu0 0
    %801 = vmatprep.subr.bf16.mxu0 0
    %802 = vmatpush1.bf16.msra.mxu0 0
    %803 = vmatprep.subr.bf16.mxu0 0
    %804 = vmatpush1.bf16.msra.mxu0 0
    %805 = vmatprep.subr.bf16.mxu0 0
    %806 = vmatpush1.bf16.msra.mxu0 0
    %807 = vmatprep.subr.bf16.mxu0 0
    %808 = vmatpush1.bf16.msra.mxu0 0
    %809 = vmatprep.subr.bf16.mxu0 0
    %810 = vmatpush1.bf16.msra.mxu0 0
    %811 = vmatprep.subr.bf16.mxu0 0
    %812 = vmatpush1.bf16.msra.mxu0 0
    %813 = vmatprep.subr.bf16.mxu0 0
    %814 = vmatpush1.bf16.msra.mxu0 0
    %815 = vmatprep.subr.bf16.mxu0 0
    %816 = vmatpush1.bf16.msra.mxu0 0
    %817 = vmatprep.subr.bf16.mxu0 0
    %818 = vmatpush1.bf16.msra.mxu0 0
    %819 = vmatprep.subr.bf16.mxu0 0
    %820 = vmatpush1.bf16.msra.mxu0 0
    %821 = vmatprep.subr.bf16.mxu0 0
    %822 = vmatpush1.bf16.msra.mxu0 0
    %823 = vmatprep.subr.bf16.mxu0 0
    %824 = vmatpush1.bf16.msra.mxu0 0
    %825 = vmatprep.mubr.bf16.mxu0 0
    %826 = vmatmul.mubr.bf16.gmra.mrb[0].mxu0 %v788
    %v827 = vpop.f32.mrb[0].mxu0
    %v828 = vadd.f32 %v782, %v827
    %v829 = vpop.f32.mrb[0].mxu0
    %v830 = vpop.f32.mrb[0].mxu0
    %v831 = vpop.f32.mrb[0].mxu0
    %832 = vdwg.mxu0
    %v833 = vmul.f32 %v828, 0.5
    %v834 = vlaneseq
    %v835 = vshrl.u32 %v834, 7
    %v836 = vsub.s32 6, %v835
    %v837 = vrot.slane %v54, %v836
    %v838 = vadd.f32 %v833, %v837
    %v839 = vld [vmem:[%s7] sm:$0xf]
    %v840 = vld [vmem:[%s7 + $0x4] sm:$0xf]
    %v841 = vld [vmem:[%s8] sm:$0x7f]
    %v842 = vpack.c.bf16 %v838, %v838
    %v845 = vunpack.c.l.b16 %v839
    %v846 = vunpack.c.l.b16 %v840
    %v847 = vpack.c.b16 %v846, %v845
    %v850 = vsel %vm292, %v842, 0
    %852 = vmatprep.subr.bf16.mxu0 0
    %853 = vmatpush1.bf16.msra.mxu0 %v847
    %854 = vmatprep.subr.bf16.mxu0 0
    %855 = vmatpush1.bf16.msra.mxu0 0
    %856 = vmatprep.subr.bf16.mxu0 0
    %857 = vmatpush1.bf16.msra.mxu0 0
    %858 = vmatprep.subr.bf16.mxu0 0
    %859 = vmatpush1.bf16.msra.mxu0 0
    %860 = vmatprep.subr.bf16.mxu0 0
    %861 = vmatpush1.bf16.msra.mxu0 0
    %862 = vmatprep.subr.bf16.mxu0 0
    %863 = vmatpush1.bf16.msra.mxu0 0
    %864 = vmatprep.subr.bf16.mxu0 0
    %865 = vmatpush1.bf16.msra.mxu0 0
    %866 = vmatprep.subr.bf16.mxu0 0
    %867 = vmatpush1.bf16.msra.mxu0 0
    %868 = vmatprep.subr.bf16.mxu0 0
    %869 = vmatpush1.bf16.msra.mxu0 0
    %870 = vmatprep.subr.bf16.mxu0 0
    %871 = vmatpush1.bf16.msra.mxu0 0
    %872 = vmatprep.subr.bf16.mxu0 0
    %873 = vmatpush1.bf16.msra.mxu0 0
    %874 = vmatprep.subr.bf16.mxu0 0
    %875 = vmatpush1.bf16.msra.mxu0 0
    %876 = vmatprep.subr.bf16.mxu0 0
    %877 = vmatpush1.bf16.msra.mxu0 0
    %878 = vmatprep.subr.bf16.mxu0 0
    %879 = vmatpush1.bf16.msra.mxu0 0
    %880 = vmatprep.subr.bf16.mxu0 0
    %881 = vmatpush1.bf16.msra.mxu0 0
    %882 = vmatprep.subr.bf16.mxu0 0
    %883 = vmatpush1.bf16.msra.mxu0 0
    %884 = vmatprep.mubr.bf16.mxu0 0
    %885 = vmatmul.mubr.bf16.gmra.mrb[0].mxu0 %v850
    %v886 = vpop.f32.mrb[0].mxu0
    %v887 = vadd.f32 0.0, %v886
    %v888 = vpop.f32.mrb[0].mxu0
    %v889 = vpop.f32.mrb[0].mxu0
    %v890 = vpop.f32.mrb[0].mxu0
    %891 = vdwg.mxu0
    %v892 = vlaneseq
    %v893 = vshrl.u32 %v892, 7
    %v894 = vsub.s32 0, %v893
    %v895 = vrot.slane %v841, %v894
    %v896 = vadd.f32 %v887, %v895
    %v897 = vlaneseq
    %v898 = vshrl.u32 %v897, 7
    %v899 = vsub.s32 2, %v898
    %v900 = vrot.slane %v841, %v899
    %902 = vrot.lane.b32.xlu0 %v900, 16
    %v903 = vpop.permute.xlu0 %902
    %v905 = vadd.f32 %v887, %v903
    %v906 = vld [vmem:[%s9] sm:$0xf]
    %v907 = vld [vmem:[%s9 + $0x4] sm:$0xf]
    %v908 = vld [vmem:[%s9 + $0x8] sm:$0xf]
    %v909 = vld [vmem:[%s9 + $0xc] sm:$0xf]
    %v910 = vld [vmem:[%s9 + $0x10] sm:$0xf]
    %v911 = vld [vmem:[%s9 + $0x14] sm:$0xf]
    %v912 = vld [vmem:[%s9 + $0x18] sm:$0xf]
    %v913 = vld [vmem:[%s9 + $0x1c] sm:$0xf]
    %v914 = vunpack.c.l.bf16 %v906
    %v915 = vunpack.c.l.bf16 %v907
    %v916 = vunpack.c.l.bf16 %v908
    %v917 = vunpack.c.l.bf16 %v909
    %v918 = vunpack.c.l.bf16 %v910
    %v919 = vunpack.c.l.bf16 %v911
    %v920 = vunpack.c.l.bf16 %v912
    %v921 = vunpack.c.l.bf16 %v913
    %v923 = vcombine.high %v905, %v905
    %v925 = vunpack.c.l.s4 1966171168
    %v926 = vunpack.c.0.s8 %v925
    %v927 = vlaneseq
    %v928 = vshrl.u32 %v927, 7
    %v929 = vsub.s32 %v926, %v928
    %v930 = vrot.slane %v905, %v929
    %v932 = vunpack.c.l.s4 1966171168
    %v933 = vunpack.c.0.s8 %v932
    %v934 = vlaneseq
    %v935 = vshrl.u32 %v934, 7
    %v936 = vsub.s32 %v933, %v935
    %v937 = vrot.slane %v923, %v936
    %v938 = vcombine.high %v930, %v930
    %v939 = vcombine.high %v937, %v937
    %v941 = vunpack.c.l.s4 1966171168
    %v942 = vunpack.c.0.s8 %v941
    %v943 = vlaneseq
    %v944 = vshrl.u32 %v943, 7
    %v945 = vsub.s32 %v942, %v944
    %v946 = vrot.slane %v930, %v945
    %v948 = vunpack.c.l.s4 1966171168
    %v949 = vunpack.c.0.s8 %v948
    %v950 = vlaneseq
    %v951 = vshrl.u32 %v950, 7
    %v952 = vsub.s32 %v949, %v951
    %v953 = vrot.slane %v937, %v952
    %v955 = vunpack.c.l.s4 1966171168
    %v956 = vunpack.c.0.s8 %v955
    %v957 = vlaneseq
    %v958 = vshrl.u32 %v957, 7
    %v959 = vsub.s32 %v956, %v958
    %v960 = vrot.slane %v938, %v959
    %v962 = vunpack.c.l.s4 1966171168
    %v963 = vunpack.c.0.s8 %v962
    %v964 = vlaneseq
    %v965 = vshrl.u32 %v964, 7
    %v966 = vsub.s32 %v963, %v965
    %v967 = vrot.slane %v939, %v966
    %v968 = vcombine.high %v946, %v946
    %v969 = vcombine.high %v953, %v953
    %v970 = vcombine.high %v960, %v960
    %v971 = vcombine.high %v967, %v967
    %v972 = vlaneseq
    %v973 = vshrl.u32 %v972, 7
    %v974 = vsub.s32 0, %v973
    %v975 = vrot.slane %v946, %v974
    %v976 = vlaneseq
    %v977 = vshrl.u32 %v976, 7
    %v978 = vsub.s32 0, %v977
    %v979 = vrot.slane %v960, %v978
    %v980 = vlaneseq
    %v981 = vshrl.u32 %v980, 7
    %v982 = vsub.s32 0, %v981
    %v983 = vrot.slane %v968, %v982
    %v984 = vlaneseq
    %v985 = vshrl.u32 %v984, 7
    %v986 = vsub.s32 0, %v985
    %v987 = vrot.slane %v970, %v986
    %v988 = vlaneseq
    %v989 = vshrl.u32 %v988, 7
    %v990 = vsub.s32 0, %v989
    %v991 = vrot.slane %v953, %v990
    %v992 = vlaneseq
    %v993 = vshrl.u32 %v992, 7
    %v994 = vsub.s32 0, %v993
    %v995 = vrot.slane %v967, %v994
    %v996 = vlaneseq
    %v997 = vshrl.u32 %v996, 7
    %v998 = vsub.s32 0, %v997
    %v999 = vrot.slane %v969, %v998
    %v1000 = vlaneseq
    %v1001 = vshrl.u32 %v1000, 7
    %v1002 = vsub.s32 0, %v1001
    %v1003 = vrot.slane %v971, %v1002
    %1004 = vrot.lane.b32.xlu0 %v975, 112
    %v1005 = vpop.permute.xlu0 %1004
    %1006 = vrot.lane.b32.xlu0 %v979, 112
    %v1007 = vpop.permute.xlu0 %1006
    %1008 = vrot.lane.b32.xlu0 %v983, 112
    %v1009 = vpop.permute.xlu0 %1008
    %1010 = vrot.lane.b32.xlu0 %v987, 112
    %v1011 = vpop.permute.xlu0 %1010
    %1012 = vrot.lane.b32.xlu0 %v991, 112
    %v1013 = vpop.permute.xlu0 %1012
    %1014 = vrot.lane.b32.xlu0 %v995, 112
    %v1015 = vpop.permute.xlu0 %1014
    %1016 = vrot.lane.b32.xlu0 %v999, 112
    %v1017 = vpop.permute.xlu0 %1016
    %1018 = vrot.lane.b32.xlu0 %v1003, 112
    %v1019 = vpop.permute.xlu0 %1018
    %v1028 = vadd.f32 %v896, %v1005
    %v1029 = vadd.f32 %v896, %v1007
    %v1030 = vadd.f32 %v896, %v1009
    %v1031 = vadd.f32 %v896, %v1011
    %v1032 = vadd.f32 %v896, %v1013
    %v1033 = vadd.f32 %v896, %v1015
    %v1034 = vadd.f32 %v896, %v1017
    %v1035 = vadd.f32 %v896, %v1019
    %v1036 = vadd.f32 %v1028, %v914
    %v1037 = vadd.f32 %v1029, %v915
    %v1038 = vadd.f32 %v1030, %v916
    %v1039 = vadd.f32 %v1031, %v917
    %v1040 = vadd.f32 %v1032, %v918
    %v1041 = vadd.f32 %v1033, %v919
    %v1042 = vadd.f32 %v1034, %v920
    %v1043 = vadd.f32 %v1035, %v921
    %vm1044 = vcmp.ge.f32.partialorder %v1036, 0.0
    %vm1045 = vcmp.ge.f32.partialorder %v1037, 0.0
    %vm1046 = vcmp.ge.f32.partialorder %v1038, 0.0
    %vm1047 = vcmp.ge.f32.partialorder %v1039, 0.0
    %vm1048 = vcmp.ge.f32.partialorder %v1040, 0.0
    %vm1049 = vcmp.ge.f32.partialorder %v1041, 0.0
    %vm1050 = vcmp.ge.f32.partialorder %v1042, 0.0
    %vm1051 = vcmp.ge.f32.partialorder %v1043, 0.0
    %v1052 = vmul.f32 %v1036, 0.2
    %v1053 = vmul.f32 %v1037, 0.2
    %v1054 = vmul.f32 %v1038, 0.2
    %v1055 = vmul.f32 %v1039, 0.2
    %v1056 = vmul.f32 %v1040, 0.2
    %v1057 = vmul.f32 %v1041, 0.2
    %v1058 = vmul.f32 %v1042, 0.2
    %v1059 = vmul.f32 %v1043, 0.2
    %v1060 = vsel %vm1044, %v1036, %v1052
    %v1061 = vsel %vm1045, %v1037, %v1053
    %v1062 = vsel %vm1046, %v1038, %v1054
    %v1063 = vsel %vm1047, %v1039, %v1055
    %v1064 = vsel %vm1048, %v1040, %v1056
    %v1065 = vsel %vm1049, %v1041, %v1057
    %v1066 = vsel %vm1050, %v1042, %v1058
    %v1067 = vsel %vm1051, %v1043, %v1059
    %v1068 = vlaneseq
    %v1069 = vshrl.u32 %v1068, 7
    %v1070 = vsub.s32 4, %v1069
    %v1071 = vrot.slane %v841, %v1070
    %v1072 = vmul.f32 %v1060, %v1071
    %v1073 = vmul.f32 %v1061, %v1071
    %v1074 = vmul.f32 %v1062, %v1071
    %v1075 = vmul.f32 %v1063, %v1071
    %v1076 = vmul.f32 %v1064, %v1071
    %v1077 = vmul.f32 %v1065, %v1071
    %v1078 = vmul.f32 %v1066, %v1071
    %v1079 = vmul.f32 %v1067, %v1071
    %v1080 = vsel %vm56, %v1072, 0.0
    %1081 = vadd.xlane.f32.xlu0 %v1080
    %v1082 = vpop.xlane.xlu0 %1081
    %v1083 = vsel %vm56, %v1073, 0.0
    %1084 = vadd.xlane.f32.xlu0 %v1083
    %v1085 = vpop.xlane.xlu0 %1084
    %v1086 = vsel %vm56, %v1074, 0.0
    %1087 = vadd.xlane.f32.xlu0 %v1086
    %v1088 = vpop.xlane.xlu0 %1087
    %v1089 = vsel %vm56, %v1075, 0.0
    %1090 = vadd.xlane.f32.xlu0 %v1089
    %v1091 = vpop.xlane.xlu0 %1090
    %v1092 = vsel %vm56, %v1076, 0.0
    %1093 = vadd.xlane.f32.xlu0 %v1092
    %v1094 = vpop.xlane.xlu0 %1093
    %v1095 = vsel %vm56, %v1077, 0.0
    %1096 = vadd.xlane.f32.xlu0 %v1095
    %v1097 = vpop.xlane.xlu0 %1096
    %v1098 = vsel %vm56, %v1078, 0.0
    %1099 = vadd.xlane.f32.xlu0 %v1098
    %v1100 = vpop.xlane.xlu0 %1099
    %v1101 = vsel %vm56, %v1079, 0.0
    %1102 = vadd.xlane.f32.xlu0 %v1101
    %v1103 = vpop.xlane.xlu0 %1102
    %v1112 = vlaneseq
    %v1113 = vshrl.u32 %v1112, 7
    %v1114 = vsub.s32 %v327, %v1113
    %v1115 = vrot.slane %v1082, %v1114
    %v1116 = vlaneseq
    %v1117 = vshrl.u32 %v1116, 7
    %v1118 = vsub.s32 %v327, %v1117
    %v1119 = vrot.slane %v1085, %v1118
    %v1120 = vlaneseq
    %v1121 = vshrl.u32 %v1120, 7
    %v1122 = vsub.s32 %v327, %v1121
    %v1123 = vrot.slane %v1088, %v1122
    %v1124 = vlaneseq
    %v1125 = vshrl.u32 %v1124, 7
    %v1126 = vsub.s32 %v327, %v1125
    %v1127 = vrot.slane %v1091, %v1126
    %v1128 = vlaneseq
    %v1129 = vshrl.u32 %v1128, 7
    %v1130 = vsub.s32 %v327, %v1129
    %v1131 = vrot.slane %v1094, %v1130
    %v1132 = vlaneseq
    %v1133 = vshrl.u32 %v1132, 7
    %v1134 = vsub.s32 %v327, %v1133
    %v1135 = vrot.slane %v1097, %v1134
    %v1136 = vlaneseq
    %v1137 = vshrl.u32 %v1136, 7
    %v1138 = vsub.s32 %v327, %v1137
    %v1139 = vrot.slane %v1100, %v1138
    %v1140 = vlaneseq
    %v1141 = vshrl.u32 %v1140, 7
    %v1142 = vsub.s32 %v327, %v1141
    %v1143 = vrot.slane %v1103, %v1142
    %v1144 = vsel %vm360, %v1119, %v1115
    %v1145 = vsel %vm362, %v1123, %v1144
    %v1146 = vsel %vm364, %v1127, %v1145
    %v1147 = vsel %vm366, %v1131, %v1146
    %v1148 = vsel %vm368, %v1135, %v1147
    %v1149 = vsel %vm370, %v1139, %v1148
    %v1150 = vsel %vm372, %v1143, %v1149
    %v1152 = vsel %vm317, %v1150, -1e+30
    %v1153 = vsel %vm56, %v1152, -inf
    %1154 = vmax.xlane.f32.xlu0 %v1153
    %v1155 = vpop.xlane.xlu0 %1154
    %v1156 = vsub.f32 %v1152, %v1155
    %v1157 = vmul.f32 %v1156, 1.442695
    %v1158 = vpow.pop %v1157
    %v1159 = vsel %vm56, %v1158, 0.0
    %1160 = vadd.xlane.f32.xlu0 %v1159
    %v1161 = vpop.xlane.xlu0 %1160
    %v1162 = vmax.f32 %v1161, 1e-20
    %v1163 = vrcp.pop %v1162
    %v1164 = vmul.f32 %v1158, %v1163
    %v1165 = vpack.c.bf16 %v1164, %v1164
    %v1166 = vpack.c.bf16 %v896, %v896
    %v1167 = vlaneseq
    %v1168 = vshrl.u32 %v1167, 7
    %v1169 = vsub.s32 1, %v1168
    %v1170 = vrot.slane %v841, %v1169
    %1172 = vrot.lane.b32.xlu0 %v1170, 8
    %v1173 = vpop.permute.xlu0 %1172
    %v1175 = vadd.f32 %v887, %v1173
    %v1176 = vlaneseq
    %v1177 = vshrl.u32 %v1176, 7
    %v1178 = vsub.s32 3, %v1177
    %v1179 = vrot.slane %v841, %v1178
    %1181 = vrot.lane.b32.xlu0 %v1179, 24
    %v1182 = vpop.permute.xlu0 %1181
    %v1184 = vadd.f32 %v887, %v1182
    %s1185 = scalar_lea.vmem %s9, 32
    %v1186 = vld [vmem:[%s1185] sm:$0xf]
    %v1187 = vld [vmem:[%s1185 + $0x4] sm:$0xf]
    %v1188 = vld [vmem:[%s1185 + $0x8] sm:$0xf]
    %v1189 = vld [vmem:[%s1185 + $0xc] sm:$0xf]
    %v1190 = vld [vmem:[%s1185 + $0x10] sm:$0xf]
    %v1191 = vld [vmem:[%s1185 + $0x14] sm:$0xf]
    %v1192 = vld [vmem:[%s1185 + $0x18] sm:$0xf]
    %v1193 = vld [vmem:[%s1185 + $0x1c] sm:$0xf]
    %v1194 = vunpack.c.l.bf16 %v1186
    %v1195 = vunpack.c.l.bf16 %v1187
    %v1196 = vunpack.c.l.bf16 %v1188
    %v1197 = vunpack.c.l.bf16 %v1189
    %v1198 = vunpack.c.l.bf16 %v1190
    %v1199 = vunpack.c.l.bf16 %v1191
    %v1200 = vunpack.c.l.bf16 %v1192
    %v1201 = vunpack.c.l.bf16 %v1193
    %v1203 = vcombine.high %v1184, %v1184
    %v1205 = vunpack.c.l.s4 1966171168
    %v1206 = vunpack.c.0.s8 %v1205
    %v1207 = vlaneseq
    %v1208 = vshrl.u32 %v1207, 7
    %v1209 = vsub.s32 %v1206, %v1208
    %v1210 = vrot.slane %v1184, %v1209
    %v1212 = vunpack.c.l.s4 1966171168
    %v1213 = vunpack.c.0.s8 %v1212
    %v1214 = vlaneseq
    %v1215 = vshrl.u32 %v1214, 7
    %v1216 = vsub.s32 %v1213, %v1215
    %v1217 = vrot.slane %v1203, %v1216
    %v1218 = vcombine.high %v1210, %v1210
    %v1219 = vcombine.high %v1217, %v1217
    %v1221 = vunpack.c.l.s4 1966171168
    %v1222 = vunpack.c.0.s8 %v1221
    %v1223 = vlaneseq
    %v1224 = vshrl.u32 %v1223, 7
    %v1225 = vsub.s32 %v1222, %v1224
    %v1226 = vrot.slane %v1210, %v1225
    %v1228 = vunpack.c.l.s4 1966171168
    %v1229 = vunpack.c.0.s8 %v1228
    %v1230 = vlaneseq
    %v1231 = vshrl.u32 %v1230, 7
    %v1232 = vsub.s32 %v1229, %v1231
    %v1233 = vrot.slane %v1217, %v1232
    %v1235 = vunpack.c.l.s4 1966171168
    %v1236 = vunpack.c.0.s8 %v1235
    %v1237 = vlaneseq
    %v1238 = vshrl.u32 %v1237, 7
    %v1239 = vsub.s32 %v1236, %v1238
    %v1240 = vrot.slane %v1218, %v1239
    %v1242 = vunpack.c.l.s4 1966171168
    %v1243 = vunpack.c.0.s8 %v1242
    %v1244 = vlaneseq
    %v1245 = vshrl.u32 %v1244, 7
    %v1246 = vsub.s32 %v1243, %v1245
    %v1247 = vrot.slane %v1219, %v1246
    %v1248 = vcombine.high %v1226, %v1226
    %v1249 = vcombine.high %v1233, %v1233
    %v1250 = vcombine.high %v1240, %v1240
    %v1251 = vcombine.high %v1247, %v1247
    %v1252 = vlaneseq
    %v1253 = vshrl.u32 %v1252, 7
    %v1254 = vsub.s32 0, %v1253
    %v1255 = vrot.slane %v1226, %v1254
    %v1256 = vlaneseq
    %v1257 = vshrl.u32 %v1256, 7
    %v1258 = vsub.s32 0, %v1257
    %v1259 = vrot.slane %v1240, %v1258
    %v1260 = vlaneseq
    %v1261 = vshrl.u32 %v1260, 7
    %v1262 = vsub.s32 0, %v1261
    %v1263 = vrot.slane %v1248, %v1262
    %v1264 = vlaneseq
    %v1265 = vshrl.u32 %v1264, 7
    %v1266 = vsub.s32 0, %v1265
    %v1267 = vrot.slane %v1250, %v1266
    %v1268 = vlaneseq
    %v1269 = vshrl.u32 %v1268, 7
    %v1270 = vsub.s32 0, %v1269
    %v1271 = vrot.slane %v1233, %v1270
    %v1272 = vlaneseq
    %v1273 = vshrl.u32 %v1272, 7
    %v1274 = vsub.s32 0, %v1273
    %v1275 = vrot.slane %v1247, %v1274
    %v1276 = vlaneseq
    %v1277 = vshrl.u32 %v1276, 7
    %v1278 = vsub.s32 0, %v1277
    %v1279 = vrot.slane %v1249, %v1278
    %v1280 = vlaneseq
    %v1281 = vshrl.u32 %v1280, 7
    %v1282 = vsub.s32 0, %v1281
    %v1283 = vrot.slane %v1251, %v1282
    %1284 = vrot.lane.b32.xlu0 %v1255, 112
    %v1285 = vpop.permute.xlu0 %1284
    %1286 = vrot.lane.b32.xlu0 %v1259, 112
    %v1287 = vpop.permute.xlu0 %1286
    %1288 = vrot.lane.b32.xlu0 %v1263, 112
    %v1289 = vpop.permute.xlu0 %1288
    %1290 = vrot.lane.b32.xlu0 %v1267, 112
    %v1291 = vpop.permute.xlu0 %1290
    %1292 = vrot.lane.b32.xlu0 %v1271, 112
    %v1293 = vpop.permute.xlu0 %1292
    %1294 = vrot.lane.b32.xlu0 %v1275, 112
    %v1295 = vpop.permute.xlu0 %1294
    %1296 = vrot.lane.b32.xlu0 %v1279, 112
    %v1297 = vpop.permute.xlu0 %1296
    %1298 = vrot.lane.b32.xlu0 %v1283, 112
    %v1299 = vpop.permute.xlu0 %1298
    %v1308 = vadd.f32 %v1175, %v1285
    %v1309 = vadd.f32 %v1175, %v1287
    %v1310 = vadd.f32 %v1175, %v1289
    %v1311 = vadd.f32 %v1175, %v1291
    %v1312 = vadd.f32 %v1175, %v1293
    %v1313 = vadd.f32 %v1175, %v1295
    %v1314 = vadd.f32 %v1175, %v1297
    %v1315 = vadd.f32 %v1175, %v1299
    %1324 = vrot.lane.b32.xlu0 %v1194, 8
    %v1325 = vpop.permute.xlu0 %1324
    %1326 = vrot.lane.b32.xlu0 %v1195, 8
    %v1327 = vpop.permute.xlu0 %1326
    %1328 = vrot.lane.b32.xlu0 %v1196, 8
    %v1329 = vpop.permute.xlu0 %1328
    %1330 = vrot.lane.b32.xlu0 %v1197, 8
    %v1331 = vpop.permute.xlu0 %1330
    %1332 = vrot.lane.b32.xlu0 %v1198, 8
    %v1333 = vpop.permute.xlu0 %1332
    %1334 = vrot.lane.b32.xlu0 %v1199, 8
    %v1335 = vpop.permute.xlu0 %1334
    %1336 = vrot.lane.b32.xlu0 %v1200, 8
    %v1337 = vpop.permute.xlu0 %1336
    %1338 = vrot.lane.b32.xlu0 %v1201, 8
    %v1339 = vpop.permute.xlu0 %1338
    %v1348 = vadd.f32 %v1308, %v1325
    %v1349 = vadd.f32 %v1309, %v1327
    %v1350 = vadd.f32 %v1310, %v1329
    %v1351 = vadd.f32 %v1311, %v1331
    %v1352 = vadd.f32 %v1312, %v1333
    %v1353 = vadd.f32 %v1313, %v1335
    %v1354 = vadd.f32 %v1314, %v1337
    %v1355 = vadd.f32 %v1315, %v1339
    %vm1356 = vcmp.ge.f32.partialorder %v1348, 0.0
    %vm1357 = vcmp.ge.f32.partialorder %v1349, 0.0
    %vm1358 = vcmp.ge.f32.partialorder %v1350, 0.0
    %vm1359 = vcmp.ge.f32.partialorder %v1351, 0.0
    %vm1360 = vcmp.ge.f32.partialorder %v1352, 0.0
    %vm1361 = vcmp.ge.f32.partialorder %v1353, 0.0
    %vm1362 = vcmp.ge.f32.partialorder %v1354, 0.0
    %vm1363 = vcmp.ge.f32.partialorder %v1355, 0.0
    %v1364 = vmul.f32 %v1348, 0.2
    %v1365 = vmul.f32 %v1349, 0.2
    %v1366 = vmul.f32 %v1350, 0.2
    %v1367 = vmul.f32 %v1351, 0.2
    %v1368 = vmul.f32 %v1352, 0.2
    %v1369 = vmul.f32 %v1353, 0.2
    %v1370 = vmul.f32 %v1354, 0.2
    %v1371 = vmul.f32 %v1355, 0.2
    %v1372 = vsel %vm1356, %v1348, %v1364
    %v1373 = vsel %vm1357, %v1349, %v1365
    %v1374 = vsel %vm1358, %v1350, %v1366
    %v1375 = vsel %vm1359, %v1351, %v1367
    %v1376 = vsel %vm1360, %v1352, %v1368
    %v1377 = vsel %vm1361, %v1353, %v1369
    %v1378 = vsel %vm1362, %v1354, %v1370
    %v1379 = vsel %vm1363, %v1355, %v1371
    %v1380 = vlaneseq
    %v1381 = vshrl.u32 %v1380, 7
    %v1382 = vsub.s32 5, %v1381
    %v1383 = vrot.slane %v841, %v1382
    %1385 = vrot.lane.b32.xlu0 %v1383, 8
    %v1386 = vpop.permute.xlu0 %1385
    %v1388 = vmul.f32 %v1372, %v1386
    %v1389 = vmul.f32 %v1373, %v1386
    %v1390 = vmul.f32 %v1374, %v1386
    %v1391 = vmul.f32 %v1375, %v1386
    %v1392 = vmul.f32 %v1376, %v1386
    %v1393 = vmul.f32 %v1377, %v1386
    %v1394 = vmul.f32 %v1378, %v1386
    %v1395 = vmul.f32 %v1379, %v1386
    %1404 = vrot.lane.b32.xlu0 %v1388, 120
    %v1405 = vpop.permute.xlu0 %1404
    %1406 = vrot.lane.b32.xlu0 %v1389, 120
    %v1407 = vpop.permute.xlu0 %1406
    %1408 = vrot.lane.b32.xlu0 %v1390, 120
    %v1409 = vpop.permute.xlu0 %1408
    %1410 = vrot.lane.b32.xlu0 %v1391, 120
    %v1411 = vpop.permute.xlu0 %1410
    %1412 = vrot.lane.b32.xlu0 %v1392, 120
    %v1413 = vpop.permute.xlu0 %1412
    %1414 = vrot.lane.b32.xlu0 %v1393, 120
    %v1415 = vpop.permute.xlu0 %1414
    %1416 = vrot.lane.b32.xlu0 %v1394, 120
    %v1417 = vpop.permute.xlu0 %1416
    %1418 = vrot.lane.b32.xlu0 %v1395, 120
    %v1419 = vpop.permute.xlu0 %1418
    %v1428 = vsel %vm56, %v1405, 0.0
    %1429 = vadd.xlane.f32.xlu0 %v1428
    %v1430 = vpop.xlane.xlu0 %1429
    %v1431 = vsel %vm56, %v1407, 0.0
    %1432 = vadd.xlane.f32.xlu0 %v1431
    %v1433 = vpop.xlane.xlu0 %1432
    %v1434 = vsel %vm56, %v1409, 0.0
    %1435 = vadd.xlane.f32.xlu0 %v1434
    %v1436 = vpop.xlane.xlu0 %1435
    %v1437 = vsel %vm56, %v1411, 0.0
    %1438 = vadd.xlane.f32.xlu0 %v1437
    %v1439 = vpop.xlane.xlu0 %1438
    %v1440 = vsel %vm56, %v1413, 0.0
    %1441 = vadd.xlane.f32.xlu0 %v1440
    %v1442 = vpop.xlane.xlu0 %1441
    %v1443 = vsel %vm56, %v1415, 0.0
    %1444 = vadd.xlane.f32.xlu0 %v1443
    %v1445 = vpop.xlane.xlu0 %1444
    %v1446 = vsel %vm56, %v1417, 0.0
    %1447 = vadd.xlane.f32.xlu0 %v1446
    %v1448 = vpop.xlane.xlu0 %1447
    %v1449 = vsel %vm56, %v1419, 0.0
    %1450 = vadd.xlane.f32.xlu0 %v1449
    %v1451 = vpop.xlane.xlu0 %1450
    %v1460 = vlaneseq
    %v1461 = vshrl.u32 %v1460, 7
    %v1462 = vsub.s32 %v327, %v1461
    %v1463 = vrot.slane %v1430, %v1462
    %v1464 = vlaneseq
    %v1465 = vshrl.u32 %v1464, 7
    %v1466 = vsub.s32 %v327, %v1465
    %v1467 = vrot.slane %v1433, %v1466
    %v1468 = vlaneseq
    %v1469 = vshrl.u32 %v1468, 7
    %v1470 = vsub.s32 %v327, %v1469
    %v1471 = vrot.slane %v1436, %v1470
    %v1472 = vlaneseq
    %v1473 = vshrl.u32 %v1472, 7
    %v1474 = vsub.s32 %v327, %v1473
    %v1475 = vrot.slane %v1439, %v1474
    %v1476 = vlaneseq
    %v1477 = vshrl.u32 %v1476, 7
    %v1478 = vsub.s32 %v327, %v1477
    %v1479 = vrot.slane %v1442, %v1478
    %v1480 = vlaneseq
    %v1481 = vshrl.u32 %v1480, 7
    %v1482 = vsub.s32 %v327, %v1481
    %v1483 = vrot.slane %v1445, %v1482
    %v1484 = vlaneseq
    %v1485 = vshrl.u32 %v1484, 7
    %v1486 = vsub.s32 %v327, %v1485
    %v1487 = vrot.slane %v1448, %v1486
    %v1488 = vlaneseq
    %v1489 = vshrl.u32 %v1488, 7
    %v1490 = vsub.s32 %v327, %v1489
    %v1491 = vrot.slane %v1451, %v1490
    %v1492 = vsel %vm360, %v1467, %v1463
    %v1493 = vsel %vm362, %v1471, %v1492
    %v1494 = vsel %vm364, %v1475, %v1493
    %v1495 = vsel %vm366, %v1479, %v1494
    %v1496 = vsel %vm368, %v1483, %v1495
    %v1497 = vsel %vm370, %v1487, %v1496
    %v1498 = vsel %vm372, %v1491, %v1497
    %v1500 = vsel %vm317, %v1498, -1e+30
    %v1501 = vsel %vm56, %v1500, -inf
    %1502 = vmax.xlane.f32.xlu0 %v1501
    %v1503 = vpop.xlane.xlu0 %1502
    %v1504 = vsub.f32 %v1500, %v1503
    %v1505 = vmul.f32 %v1504, 1.442695
    %v1506 = vpow.pop %v1505
    %v1507 = vsel %vm56, %v1506, 0.0
    %1508 = vadd.xlane.f32.xlu0 %v1507
    %v1509 = vpop.xlane.xlu0 %1508
    %v1510 = vmax.f32 %v1509, 1e-20
    %v1511 = vrcp.pop %v1510
    %v1512 = vmul.f32 %v1506, %v1511
    %v1513 = vpack.c.bf16 %v1512, %v1512
    %v1514 = vpack.c.bf16 %v1175, %v1175
    %1516 = vrot.lane.b32.xlu0 %v1514, 120
    %v1517 = vpop.permute.xlu0 %1516
    %v1519 = vsel %vm56, %v1513, 0
    %v1522 = vsel %vm60, %v1517, 0
    %1524 = vmatprep.subr.bf16.mxu0 0
    %1525 = vmatpush1.bf16.msra.mxu0 %v1522
    %1526 = vmatprep.subr.bf16.mxu0 0
    %1527 = vmatpush1.bf16.msra.mxu0 0
    %1528 = vmatprep.subr.bf16.mxu0 0
    %1529 = vmatpush1.bf16.msra.mxu0 0
    %1530 = vmatprep.subr.bf16.mxu0 0
    %1531 = vmatpush1.bf16.msra.mxu0 0
    %1532 = vmatprep.subr.bf16.mxu0 0
    %1533 = vmatpush1.bf16.msra.mxu0 0
    %1534 = vmatprep.subr.bf16.mxu0 0
    %1535 = vmatpush1.bf16.msra.mxu0 0
    %1536 = vmatprep.subr.bf16.mxu0 0
    %1537 = vmatpush1.bf16.msra.mxu0 0
    %1538 = vmatprep.subr.bf16.mxu0 0
    %1539 = vmatpush1.bf16.msra.mxu0 0
    %1540 = vmatprep.subr.bf16.mxu0 0
    %1541 = vmatpush1.bf16.msra.mxu0 0
    %1542 = vmatprep.subr.bf16.mxu0 0
    %1543 = vmatpush1.bf16.msra.mxu0 0
    %1544 = vmatprep.subr.bf16.mxu0 0
    %1545 = vmatpush1.bf16.msra.mxu0 0
    %1546 = vmatprep.subr.bf16.mxu0 0
    %1547 = vmatpush1.bf16.msra.mxu0 0
    %1548 = vmatprep.subr.bf16.mxu0 0
    %1549 = vmatpush1.bf16.msra.mxu0 0
    %1550 = vmatprep.subr.bf16.mxu0 0
    %1551 = vmatpush1.bf16.msra.mxu0 0
    %1552 = vmatprep.subr.bf16.mxu0 0
    %1553 = vmatpush1.bf16.msra.mxu0 0
    %1554 = vmatprep.subr.bf16.mxu0 0
    %1555 = vmatpush1.bf16.msra.mxu0 0
    %1556 = vmatprep.mubr.bf16.mxu0 0
    %1557 = vmatmul.mubr.bf16.gmra.mrb[0].mxu0 %v1519
    %v1558 = vpop.f32.mrb[0].mxu0
    %v1559 = vadd.f32 0.0, %v1558
    %v1560 = vpop.f32.mrb[0].mxu0
    %v1561 = vpop.f32.mrb[0].mxu0
    %v1562 = vpop.f32.mrb[0].mxu0
    %1563 = vdwg.mxu0
    %v1565 = vsel %vm56, %v1165, 0
    %v1568 = vsel %vm60, %v1166, 0
    %1570 = vmatprep.subr.bf16.mxu0 0
    %1571 = vmatpush1.bf16.msra.mxu0 %v1568
    %1572 = vmatprep.subr.bf16.mxu0 0
    %1573 = vmatpush1.bf16.msra.mxu0 0
    %1574 = vmatprep.subr.bf16.mxu0 0
    %1575 = vmatpush1.bf16.msra.mxu0 0
    %1576 = vmatprep.subr.bf16.mxu0 0
    %1577 = vmatpush1.bf16.msra.mxu0 0
    %1578 = vmatprep.subr.bf16.mxu0 0
    %1579 = vmatpush1.bf16.msra.mxu0 0
    %1580 = vmatprep.subr.bf16.mxu0 0
    %1581 = vmatpush1.bf16.msra.mxu0 0
    %1582 = vmatprep.subr.bf16.mxu0 0
    %1583 = vmatpush1.bf16.msra.mxu0 0
    %1584 = vmatprep.subr.bf16.mxu0 0
    %1585 = vmatpush1.bf16.msra.mxu0 0
    %1586 = vmatprep.subr.bf16.mxu0 0
    %1587 = vmatpush1.bf16.msra.mxu0 0
    %1588 = vmatprep.subr.bf16.mxu0 0
    %1589 = vmatpush1.bf16.msra.mxu0 0
    %1590 = vmatprep.subr.bf16.mxu0 0
    %1591 = vmatpush1.bf16.msra.mxu0 0
    %1592 = vmatprep.subr.bf16.mxu0 0
    %1593 = vmatpush1.bf16.msra.mxu0 0
    %1594 = vmatprep.subr.bf16.mxu0 0
    %1595 = vmatpush1.bf16.msra.mxu0 0
    %1596 = vmatprep.subr.bf16.mxu0 0
    %1597 = vmatpush1.bf16.msra.mxu0 0
    %1598 = vmatprep.subr.bf16.mxu0 0
    %1599 = vmatpush1.bf16.msra.mxu0 0
    %1600 = vmatprep.subr.bf16.mxu0 0
    %1601 = vmatpush1.bf16.msra.mxu0 0
    %1602 = vmatprep.mubr.bf16.mxu0 0
    %1603 = vmatmul.mubr.bf16.gmra.mrb[0].mxu0 %v1565
    %v1604 = vpop.f32.mrb[0].mxu0
    %v1605 = vadd.f32 %v1559, %v1604
    %v1606 = vpop.f32.mrb[0].mxu0
    %v1607 = vpop.f32.mrb[0].mxu0
    %v1608 = vpop.f32.mrb[0].mxu0
    %1609 = vdwg.mxu0
    %v1610 = vmul.f32 %v1605, 0.5
    %v1611 = vlaneseq
    %v1612 = vshrl.u32 %v1611, 7
    %v1613 = vsub.s32 6, %v1612
    %v1614 = vrot.slane %v841, %v1613
    %v1615 = vadd.f32 %v1610, %v1614
    %v1617 = vsel %vm56, %v52, 0
    %1619 = vmatprep.subr.mxu0 0.0
    %1620 = vmatpush1.msra.mxu0 %v1615
    %1621 = vmatprep.subr.mxu0 0.0
    %1622 = vmatpush1.msra.mxu0 0.0
    %1623 = vmatprep.subr.mxu0 0.0
    %1624 = vmatpush1.msra.mxu0 0.0
    %1625 = vmatprep.subr.mxu0 0.0
    %1626 = vmatpush1.msra.mxu0 0.0
    %1627 = vmatprep.subr.mxu0 0.0
    %1628 = vmatpush1.msra.mxu0 0.0
    %1629 = vmatprep.subr.mxu0 0.0
    %1630 = vmatpush1.msra.mxu0 0.0
    %1631 = vmatprep.subr.mxu0 0.0
    %1632 = vmatpush1.msra.mxu0 0.0
    %1633 = vmatprep.subr.mxu0 0.0
    %1634 = vmatpush1.msra.mxu0 0.0
    %1635 = vmatprep.subr.mxu0 0.0
    %1636 = vmatpush1.msra.mxu0 0.0
    %1637 = vmatprep.subr.mxu0 0.0
    %1638 = vmatpush1.msra.mxu0 0.0
    %1639 = vmatprep.subr.mxu0 0.0
    %1640 = vmatpush1.msra.mxu0 0.0
    %1641 = vmatprep.subr.mxu0 0.0
    %1642 = vmatpush1.msra.mxu0 0.0
    %1643 = vmatprep.subr.mxu0 0.0
    %1644 = vmatpush1.msra.mxu0 0.0
    %1645 = vmatprep.subr.mxu0 0.0
    %1646 = vmatpush1.msra.mxu0 0.0
    %1647 = vmatprep.subr.mxu0 0.0
    %1648 = vmatpush1.msra.mxu0 0.0
    %1649 = vmatprep.subr.mxu0 0.0
    %1650 = vmatpush1.msra.mxu0 0.0
    %1651 = vmatprep.subr.mxu0 0.0
    %1652 = vmatpush1.msra.mxu0 0.0
    %1653 = vmatprep.subr.mxu0 0.0
    %1654 = vmatpush1.msra.mxu0 0.0
    %1655 = vmatprep.subr.mxu0 0.0
    %1656 = vmatpush1.msra.mxu0 0.0
    %1657 = vmatprep.subr.mxu0 0.0
    %1658 = vmatpush1.msra.mxu0 0.0
    %1659 = vmatprep.subr.mxu0 0.0
    %1660 = vmatpush1.msra.mxu0 0.0
    %1661 = vmatprep.subr.mxu0 0.0
    %1662 = vmatpush1.msra.mxu0 0.0
    %1663 = vmatprep.subr.mxu0 0.0
    %1664 = vmatpush1.msra.mxu0 0.0
    %1665 = vmatprep.subr.mxu0 0.0
    %1666 = vmatpush1.msra.mxu0 0.0
    %1667 = vmatprep.subr.mxu0 0.0
    %1668 = vmatpush1.msra.mxu0 0.0
    %1669 = vmatprep.subr.mxu0 0.0
    %1670 = vmatpush1.msra.mxu0 0.0
    %1671 = vmatprep.subr.mxu0 0.0
    %1672 = vmatpush1.msra.mxu0 0.0
    %1673 = vmatprep.subr.mxu0 0.0
    %1674 = vmatpush1.msra.mxu0 0.0
    %1675 = vmatprep.subr.mxu0 0.0
    %1676 = vmatpush1.msra.mxu0 0.0
    %1677 = vmatprep.subr.mxu0 0.0
    %1678 = vmatpush1.msra.mxu0 0.0
    %1679 = vmatprep.subr.mxu0 0.0
    %1680 = vmatpush1.msra.mxu0 0.0
    %1681 = vmatprep.subr.mxu0 0.0
    %1682 = vmatpush1.msra.mxu0 0.0
    %1683 = vmatprep.mubr.f32.mxu0 0.0
    %1684 = vmatmul.mubr.f32.gmra.mrb[0].mxu0 %v1617
    %v1685 = vpop.f32.mrb[0].mxu0
    %v1686 = vadd.f32 0.0, %v1685
    %v1687 = vpop.f32.mrb[0].mxu0
    %1688 = vdwg.mxu0
    %vm1689 = vcmask 15360
    %v1691 = vsel %vm1689, %v51, 0
    %vm1693 = vcmask 1041408
    %v1695 = vsel %vm1693, %v1686, 0
    %1697 = vmatprep.subr.mxu0 0.0
    %1698 = vmatpush1.msra.mxu0 %v1695
    %1699 = vmatprep.subr.mxu0 0.0
    %1700 = vmatpush1.msra.mxu0 0.0
    %1701 = vmatprep.subr.mxu0 0.0
    %1702 = vmatpush1.msra.mxu0 0.0
    %1703 = vmatprep.subr.mxu0 0.0
    %1704 = vmatpush1.msra.mxu0 0.0
    %1705 = vmatprep.subr.mxu0 0.0
    %1706 = vmatpush1.msra.mxu0 0.0
    %1707 = vmatprep.subr.mxu0 0.0
    %1708 = vmatpush1.msra.mxu0 0.0
    %1709 = vmatprep.subr.mxu0 0.0
    %1710 = vmatpush1.msra.mxu0 0.0
    %1711 = vmatprep.subr.mxu0 0.0
    %1712 = vmatpush1.msra.mxu0 0.0
    %1713 = vmatprep.subr.mxu0 0.0
    %1714 = vmatpush1.msra.mxu0 0.0
    %1715 = vmatprep.subr.mxu0 0.0
    %1716 = vmatpush1.msra.mxu0 0.0
    %1717 = vmatprep.subr.mxu0 0.0
    %1718 = vmatpush1.msra.mxu0 0.0
    %1719 = vmatprep.subr.mxu0 0.0
    %1720 = vmatpush1.msra.mxu0 0.0
    %1721 = vmatprep.subr.mxu0 0.0
    %1722 = vmatpush1.msra.mxu0 0.0
    %1723 = vmatprep.subr.mxu0 0.0
    %1724 = vmatpush1.msra.mxu0 0.0
    %1725 = vmatprep.subr.mxu0 0.0
    %1726 = vmatpush1.msra.mxu0 0.0
    %1727 = vmatprep.subr.mxu0 0.0
    %1728 = vmatpush1.msra.mxu0 0.0
    %1729 = vmatprep.subr.mxu0 0.0
    %1730 = vmatpush1.msra.mxu0 0.0
    %1731 = vmatprep.subr.mxu0 0.0
    %1732 = vmatpush1.msra.mxu0 0.0
    %1733 = vmatprep.subr.mxu0 0.0
    %1734 = vmatpush1.msra.mxu0 0.0
    %1735 = vmatprep.subr.mxu0 0.0
    %1736 = vmatpush1.msra.mxu0 0.0
    %1737 = vmatprep.subr.mxu0 0.0
    %1738 = vmatpush1.msra.mxu0 0.0
    %1739 = vmatprep.subr.mxu0 0.0
    %1740 = vmatpush1.msra.mxu0 0.0
    %1741 = vmatprep.subr.mxu0 0.0
    %1742 = vmatpush1.msra.mxu0 0.0
    %1743 = vmatprep.subr.mxu0 0.0
    %1744 = vmatpush1.msra.mxu0 0.0
    %1745 = vmatprep.subr.mxu0 0.0
    %1746 = vmatpush1.msra.mxu0 0.0
    %1747 = vmatprep.subr.mxu0 0.0
    %1748 = vmatpush1.msra.mxu0 0.0
    %1749 = vmatprep.subr.mxu0 0.0
    %1750 = vmatpush1.msra.mxu0 0.0
    %1751 = vmatprep.subr.mxu0 0.0
    %1752 = vmatpush1.msra.mxu0 0.0
    %1753 = vmatprep.subr.mxu0 0.0
    %1754 = vmatpush1.msra.mxu0 0.0
    %1755 = vmatprep.subr.mxu0 0.0
    %1756 = vmatpush1.msra.mxu0 0.0
    %1757 = vmatprep.subr.mxu0 0.0
    %1758 = vmatpush1.msra.mxu0 0.0
    %1759 = vmatprep.subr.mxu0 0.0
    %1760 = vmatpush1.msra.mxu0 0.0
    %1761 = vmatprep.mubr.f32.mxu0 0.0
    %1762 = vmatmul.mubr.f32.gmra.mrb[0].mxu0 %v1691
    %v1763 = vpop.f32.mrb[0].mxu0
    %v1764 = vadd.f32 0.0, %v1763
    %v1765 = vpop.f32.mrb[0].mxu0
    %1766 = vdwg.mxu0
    %v1767 = vld [vmem:[%s10] sm:$0xff]
    %v1768 = vld [vmem:[%s10 + $0x8] sm:$0xff]
    %v1769 = vld [vmem:[%s10 + $0x10] sm:$0xff]
    %v1770 = vld [vmem:[%s10 + $0x18] sm:$0xff]
    %v1771 = vld [vmem:[%s10 + $0x20] sm:$0xff]
    %v1772 = vld [vmem:[%s10 + $0x28] sm:$0xff]
    %v1773 = vld [vmem:[%s10 + $0x30] sm:$0xff]
    %v1774 = vld [vmem:[%s10 + $0x38] sm:$0xff]
    %v1775 = vld [vmem:[%s11] sm:$0xf]
    %v1776 = vld [vmem:[%s11 + $0x4] sm:$0xf]
    %v1777 = vld [vmem:[%s11 + $0x8] sm:$0xf]
    %v1778 = vld [vmem:[%s11 + $0xc] sm:$0x1]
    %v1779 = vld [vmem:[%s12] sm:$0xf]
    %v1780 = vld [vmem:[%s12 + $0x4] sm:$0xf]
    %v1781 = vld [vmem:[%s12 + $0x8] sm:$0xf]
    %v1782 = vld [vmem:[%s12 + $0xc] sm:$0xf]
    %v1783 = vld [vmem:[%s13] sm:$0xf]
    %v1785 = vcombine.high %v1615, %v1615
    %v1787 = vunpack.c.l.s4 1966171168
    %v1788 = vunpack.c.0.s8 %v1787
    %v1789 = vlaneseq
    %v1790 = vshrl.u32 %v1789, 7
    %v1791 = vsub.s32 %v1788, %v1790
    %v1792 = vrot.slane %v1615, %v1791
    %v1794 = vunpack.c.l.s4 1966171168
    %v1795 = vunpack.c.0.s8 %v1794
    %v1796 = vlaneseq
    %v1797 = vshrl.u32 %v1796, 7
    %v1798 = vsub.s32 %v1795, %v1797
    %v1799 = vrot.slane %v1785, %v1798
    %v1800 = vcombine.high %v1792, %v1792
    %v1801 = vcombine.high %v1799, %v1799
    %v1803 = vunpack.c.l.s4 1966171168
    %v1804 = vunpack.c.0.s8 %v1803
    %v1805 = vlaneseq
    %v1806 = vshrl.u32 %v1805, 7
    %v1807 = vsub.s32 %v1804, %v1806
    %v1808 = vrot.slane %v1792, %v1807
    %v1810 = vunpack.c.l.s4 1966171168
    %v1811 = vunpack.c.0.s8 %v1810
    %v1812 = vlaneseq
    %v1813 = vshrl.u32 %v1812, 7
    %v1814 = vsub.s32 %v1811, %v1813
    %v1815 = vrot.slane %v1799, %v1814
    %v1817 = vunpack.c.l.s4 1966171168
    %v1818 = vunpack.c.0.s8 %v1817
    %v1819 = vlaneseq
    %v1820 = vshrl.u32 %v1819, 7
    %v1821 = vsub.s32 %v1818, %v1820
    %v1822 = vrot.slane %v1800, %v1821
    %v1824 = vunpack.c.l.s4 1966171168
    %v1825 = vunpack.c.0.s8 %v1824
    %v1826 = vlaneseq
    %v1827 = vshrl.u32 %v1826, 7
    %v1828 = vsub.s32 %v1825, %v1827
    %v1829 = vrot.slane %v1801, %v1828
    %v1830 = vcombine.high %v1808, %v1808
    %v1831 = vcombine.high %v1815, %v1815
    %v1832 = vcombine.high %v1822, %v1822
    %v1833 = vcombine.high %v1829, %v1829
    %v1834 = vlaneseq
    %v1835 = vshrl.u32 %v1834, 7
    %v1836 = vsub.s32 0, %v1835
    %v1837 = vrot.slane %v1808, %v1836
    %v1838 = vlaneseq
    %v1839 = vshrl.u32 %v1838, 7
    %v1840 = vsub.s32 0, %v1839
    %v1841 = vrot.slane %v1822, %v1840
    %v1842 = vlaneseq
    %v1843 = vshrl.u32 %v1842, 7
    %v1844 = vsub.s32 0, %v1843
    %v1845 = vrot.slane %v1830, %v1844
    %v1846 = vlaneseq
    %v1847 = vshrl.u32 %v1846, 7
    %v1848 = vsub.s32 0, %v1847
    %v1849 = vrot.slane %v1832, %v1848
    %v1850 = vlaneseq
    %v1851 = vshrl.u32 %v1850, 7
    %v1852 = vsub.s32 0, %v1851
    %v1853 = vrot.slane %v1815, %v1852
    %v1854 = vlaneseq
    %v1855 = vshrl.u32 %v1854, 7
    %v1856 = vsub.s32 0, %v1855
    %v1857 = vrot.slane %v1829, %v1856
    %v1858 = vlaneseq
    %v1859 = vshrl.u32 %v1858, 7
    %v1860 = vsub.s32 0, %v1859
    %v1861 = vrot.slane %v1831, %v1860
    %v1862 = vlaneseq
    %v1863 = vshrl.u32 %v1862, 7
    %v1864 = vsub.s32 0, %v1863
    %v1865 = vrot.slane %v1833, %v1864
    %1874 = vst.msk [vmem:[#allocation2] sm:$0xff] %vm56, %v1837
    %1875 = vst.msk [vmem:[#allocation2 + $0x8] sm:$0xff] %vm56, %v1841
    %1876 = vst.msk [vmem:[#allocation2 + $0x10] sm:$0xff] %vm56, %v1845
    %1877 = vst.msk [vmem:[#allocation2 + $0x18] sm:$0xff] %vm56, %v1849
    %1878 = vst.msk [vmem:[#allocation2 + $0x20] sm:$0xff] %vm56, %v1853
    %1879 = vst.msk [vmem:[#allocation2 + $0x28] sm:$0xff] %vm56, %v1857
    %1880 = vst.msk [vmem:[#allocation2 + $0x30] sm:$0xff] %vm56, %v1861
    %1881 = vst.msk [vmem:[#allocation2 + $0x38] sm:$0xff] %vm56, %v1865
    %v1883 = vcombine.high %v1764, %v1764
    %v1885 = vunpack.c.l.s4 1966171168
    %v1886 = vunpack.c.0.s8 %v1885
    %v1887 = vlaneseq
    %v1888 = vshrl.u32 %v1887, 7
    %v1889 = vsub.s32 %v1886, %v1888
    %v1890 = vrot.slane %v1764, %v1889
    %v1892 = vunpack.c.l.s4 1966171168
    %v1893 = vunpack.c.0.s8 %v1892
    %v1894 = vlaneseq
    %v1895 = vshrl.u32 %v1894, 7
    %v1896 = vsub.s32 %v1893, %v1895
    %v1897 = vrot.slane %v1883, %v1896
    %v1898 = vcombine.high %v1890, %v1890
    %v1899 = vcombine.high %v1897, %v1897
    %v1901 = vunpack.c.l.s4 1966171168
    %v1902 = vunpack.c.0.s8 %v1901
    %v1903 = vlaneseq
    %v1904 = vshrl.u32 %v1903, 7
    %v1905 = vsub.s32 %v1902, %v1904
    %v1906 = vrot.slane %v1890, %v1905
    %v1908 = vunpack.c.l.s4 1966171168
    %v1909 = vunpack.c.0.s8 %v1908
    %v1910 = vlaneseq
    %v1911 = vshrl.u32 %v1910, 7
    %v1912 = vsub.s32 %v1909, %v1911
    %v1913 = vrot.slane %v1897, %v1912
    %v1915 = vunpack.c.l.s4 1966171168
    %v1916 = vunpack.c.0.s8 %v1915
    %v1917 = vlaneseq
    %v1918 = vshrl.u32 %v1917, 7
    %v1919 = vsub.s32 %v1916, %v1918
    %v1920 = vrot.slane %v1898, %v1919
    %v1922 = vunpack.c.l.s4 1966171168
    %v1923 = vunpack.c.0.s8 %v1922
    %v1924 = vlaneseq
    %v1925 = vshrl.u32 %v1924, 7
    %v1926 = vsub.s32 %v1923, %v1925
    %v1927 = vrot.slane %v1899, %v1926
    %v1928 = vcombine.high %v1906, %v1906
    %v1929 = vcombine.high %v1913, %v1913
    %v1930 = vcombine.high %v1920, %v1920
    %v1931 = vcombine.high %v1927, %v1927
    %v1932 = vlaneseq
    %v1933 = vshrl.u32 %v1932, 7
    %v1934 = vsub.s32 0, %v1933
    %v1935 = vrot.slane %v1906, %v1934
    %v1936 = vlaneseq
    %v1937 = vshrl.u32 %v1936, 7
    %v1938 = vsub.s32 0, %v1937
    %v1939 = vrot.slane %v1920, %v1938
    %v1940 = vlaneseq
    %v1941 = vshrl.u32 %v1940, 7
    %v1942 = vsub.s32 0, %v1941
    %v1943 = vrot.slane %v1928, %v1942
    %v1944 = vlaneseq
    %v1945 = vshrl.u32 %v1944, 7
    %v1946 = vsub.s32 0, %v1945
    %v1947 = vrot.slane %v1930, %v1946
    %v1948 = vlaneseq
    %v1949 = vshrl.u32 %v1948, 7
    %v1950 = vsub.s32 0, %v1949
    %v1951 = vrot.slane %v1913, %v1950
    %v1952 = vlaneseq
    %v1953 = vshrl.u32 %v1952, 7
    %v1954 = vsub.s32 0, %v1953
    %v1955 = vrot.slane %v1927, %v1954
    %v1956 = vlaneseq
    %v1957 = vshrl.u32 %v1956, 7
    %v1958 = vsub.s32 0, %v1957
    %v1959 = vrot.slane %v1929, %v1958
    %v1960 = vlaneseq
    %v1961 = vshrl.u32 %v1960, 7
    %v1962 = vsub.s32 0, %v1961
    %v1963 = vrot.slane %v1931, %v1962
    %1964 = vrot.lane.b32.xlu0 %v1935, 8
    %v1965 = vpop.permute.xlu0 %1964
    %1966 = vrot.lane.b32.xlu0 %v1939, 8
    %v1967 = vpop.permute.xlu0 %1966
    %1968 = vrot.lane.b32.xlu0 %v1943, 8
    %v1969 = vpop.permute.xlu0 %1968
    %1970 = vrot.lane.b32.xlu0 %v1947, 8
    %v1971 = vpop.permute.xlu0 %1970
    %1972 = vrot.lane.b32.xlu0 %v1951, 8
    %v1973 = vpop.permute.xlu0 %1972
    %1974 = vrot.lane.b32.xlu0 %v1955, 8
    %v1975 = vpop.permute.xlu0 %1974
    %1976 = vrot.lane.b32.xlu0 %v1959, 8
    %v1977 = vpop.permute.xlu0 %1976
    %1978 = vrot.lane.b32.xlu0 %v1963, 8
    %v1979 = vpop.permute.xlu0 %1978
    %vm1988 = vcmask 130112
    %1989 = vst.msk [vmem:[#allocation2] sm:$0xff] %vm1988, %v1965
    %1990 = vst.msk [vmem:[#allocation2 + $0x8] sm:$0xff] %vm1988, %v1967
    %1991 = vst.msk [vmem:[#allocation2 + $0x10] sm:$0xff] %vm1988, %v1969
    %1992 = vst.msk [vmem:[#allocation2 + $0x18] sm:$0xff] %vm1988, %v1971
    %1993 = vst.msk [vmem:[#allocation2 + $0x20] sm:$0xff] %vm1988, %v1973
    %1994 = vst.msk [vmem:[#allocation2 + $0x28] sm:$0xff] %vm1988, %v1975
    %1995 = vst.msk [vmem:[#allocation2 + $0x30] sm:$0xff] %vm1988, %v1977
    %1996 = vst.msk [vmem:[#allocation2 + $0x38] sm:$0xff] %vm1988, %v1979
    %2005 = vrot.lane.b32.xlu0 %v1767, 16
    %v2006 = vpop.permute.xlu0 %2005
    %2007 = vrot.lane.b32.xlu0 %v1768, 16
    %v2008 = vpop.permute.xlu0 %2007
    %2009 = vrot.lane.b32.xlu0 %v1769, 16
    %v2010 = vpop.permute.xlu0 %2009
    %2011 = vrot.lane.b32.xlu0 %v1770, 16
    %v2012 = vpop.permute.xlu0 %2011
    %2013 = vrot.lane.b32.xlu0 %v1771, 16
    %v2014 = vpop.permute.xlu0 %2013
    %2015 = vrot.lane.b32.xlu0 %v1772, 16
    %v2016 = vpop.permute.xlu0 %2015
    %2017 = vrot.lane.b32.xlu0 %v1773, 16
    %v2018 = vpop.permute.xlu0 %2017
    %2019 = vrot.lane.b32.xlu0 %v1774, 16
    %v2020 = vpop.permute.xlu0 %2019
    %vm2029 = vcmask 203904
    %2030 = vst.msk [vmem:[#allocation2] sm:$0xff] %vm2029, %v2006
    %2031 = vst.msk [vmem:[#allocation2 + $0x8] sm:$0xff] %vm2029, %v2008
    %2032 = vst.msk [vmem:[#allocation2 + $0x10] sm:$0xff] %vm2029, %v2010
    %2033 = vst.msk [vmem:[#allocation2 + $0x18] sm:$0xff] %vm2029, %v2012
    %2034 = vst.msk [vmem:[#allocation2 + $0x20] sm:$0xff] %vm2029, %v2014
    %2035 = vst.msk [vmem:[#allocation2 + $0x28] sm:$0xff] %vm2029, %v2016
    %2036 = vst.msk [vmem:[#allocation2 + $0x30] sm:$0xff] %vm2029, %v2018
    %2037 = vst.msk [vmem:[#allocation2 + $0x38] sm:$0xff] %vm2029, %v2020
    %v2038 = vld [vmem:[#allocation2] sm:$0xff]
    %v2039 = vld [vmem:[#allocation2 + $0x8] sm:$0xff]
    %v2040 = vld [vmem:[#allocation2 + $0x10] sm:$0xff]
    %v2041 = vld [vmem:[#allocation2 + $0x18] sm:$0xff]
    %v2042 = vld [vmem:[#allocation2 + $0x20] sm:$0xff]
    %v2043 = vld [vmem:[#allocation2 + $0x28] sm:$0xff]
    %v2044 = vld [vmem:[#allocation2 + $0x30] sm:$0xff]
    %v2045 = vld [vmem:[#allocation2 + $0x38] sm:$0xff]
    %vm2046 = vcmask 203776
    %v2047 = vsel %vm2046, %v2038, 0.0
    %2048 = vadd.xlane.f32.xlu0 %v2047
    %v2049 = vpop.xlane.xlu0 %2048
    %v2050 = vsel %vm2046, %v2039, 0.0
    %2051 = vadd.xlane.f32.xlu0 %v2050
    %v2052 = vpop.xlane.xlu0 %2051
    %v2053 = vsel %vm2046, %v2040, 0.0
    %2054 = vadd.xlane.f32.xlu0 %v2053
    %v2055 = vpop.xlane.xlu0 %2054
    %v2056 = vsel %vm2046, %v2041, 0.0
    %2057 = vadd.xlane.f32.xlu0 %v2056
    %v2058 = vpop.xlane.xlu0 %2057
    %v2059 = vsel %vm2046, %v2042, 0.0
    %2060 = vadd.xlane.f32.xlu0 %v2059
    %v2061 = vpop.xlane.xlu0 %2060
    %v2062 = vsel %vm2046, %v2043, 0.0
    %2063 = vadd.xlane.f32.xlu0 %v2062
    %v2064 = vpop.xlane.xlu0 %2063
    %v2065 = vsel %vm2046, %v2044, 0.0
    %2066 = vadd.xlane.f32.xlu0 %v2065
    %v2067 = vpop.xlane.xlu0 %2066
    %v2068 = vsel %vm2046, %v2045, 0.0
    %2069 = vadd.xlane.f32.xlu0 %v2068
    %v2070 = vpop.xlane.xlu0 %2069
    %v2071 = vrcp.pop 25.0
    %v2072 = vmul.f32 %v2049, %v2071
    %v2073 = vmul.f32 %v2052, %v2071
    %v2074 = vmul.f32 %v2055, %v2071
    %v2075 = vmul.f32 %v2058, %v2071
    %v2076 = vmul.f32 %v2061, %v2071
    %v2077 = vmul.f32 %v2064, %v2071
    %v2078 = vmul.f32 %v2067, %v2071
    %v2079 = vmul.f32 %v2070, %v2071
    %v2080 = vsub.f32 %v2038, %v2072
    %v2081 = vsub.f32 %v2039, %v2073
    %v2082 = vsub.f32 %v2040, %v2074
    %v2083 = vsub.f32 %v2041, %v2075
    %v2084 = vsub.f32 %v2042, %v2076
    %v2085 = vsub.f32 %v2043, %v2077
    %v2086 = vsub.f32 %v2044, %v2078
    %v2087 = vsub.f32 %v2045, %v2079
    %v2088 = vmul.f32 %v2080, %v2080
    %v2089 = vmul.f32 %v2081, %v2081
    %v2090 = vmul.f32 %v2082, %v2082
    %v2091 = vmul.f32 %v2083, %v2083
    %v2092 = vmul.f32 %v2084, %v2084
    %v2093 = vmul.f32 %v2085, %v2085
    %v2094 = vmul.f32 %v2086, %v2086
    %v2095 = vmul.f32 %v2087, %v2087
    %v2096 = vsel %vm2046, %v2088, 0.0
    %2097 = vadd.xlane.f32.xlu0 %v2096
    %v2098 = vpop.xlane.xlu0 %2097
    %v2099 = vsel %vm2046, %v2089, 0.0
    %2100 = vadd.xlane.f32.xlu0 %v2099
    %v2101 = vpop.xlane.xlu0 %2100
    %v2102 = vsel %vm2046, %v2090, 0.0
    %2103 = vadd.xlane.f32.xlu0 %v2102
    %v2104 = vpop.xlane.xlu0 %2103
    %v2105 = vsel %vm2046, %v2091, 0.0
    %2106 = vadd.xlane.f32.xlu0 %v2105
    %v2107 = vpop.xlane.xlu0 %2106
    %v2108 = vsel %vm2046, %v2092, 0.0
    %2109 = vadd.xlane.f32.xlu0 %v2108
    %v2110 = vpop.xlane.xlu0 %2109
    %v2111 = vsel %vm2046, %v2093, 0.0
    %2112 = vadd.xlane.f32.xlu0 %v2111
    %v2113 = vpop.xlane.xlu0 %2112
    %v2114 = vsel %vm2046, %v2094, 0.0
    %2115 = vadd.xlane.f32.xlu0 %v2114
    %v2116 = vpop.xlane.xlu0 %2115
    %v2117 = vsel %vm2046, %v2095, 0.0
    %2118 = vadd.xlane.f32.xlu0 %v2117
    %v2119 = vpop.xlane.xlu0 %2118
    %v2120 = vmul.f32 %v2098, %v2071
    %v2121 = vmul.f32 %v2101, %v2071
    %v2122 = vmul.f32 %v2104, %v2071
    %v2123 = vmul.f32 %v2107, %v2071
    %v2124 = vmul.f32 %v2110, %v2071
    %v2125 = vmul.f32 %v2113, %v2071
    %v2126 = vmul.f32 %v2116, %v2071
    %v2127 = vmul.f32 %v2119, %v2071
    %v2128 = vadd.f32 %v2120, 1e-05
    %v2129 = vadd.f32 %v2121, 1e-05
    %v2130 = vadd.f32 %v2122, 1e-05
    %v2131 = vadd.f32 %v2123, 1e-05
    %v2132 = vadd.f32 %v2124, 1e-05
    %v2133 = vadd.f32 %v2125, 1e-05
    %v2134 = vadd.f32 %v2126, 1e-05
    %v2135 = vadd.f32 %v2127, 1e-05
    %v2136 = vrsqrt.pop %v2128
    %v2137 = vrsqrt.pop %v2129
    %v2138 = vrsqrt.pop %v2130
    %v2139 = vrsqrt.pop %v2131
    %v2140 = vrsqrt.pop %v2132
    %v2141 = vrsqrt.pop %v2133
    %v2142 = vrsqrt.pop %v2134
    %v2143 = vrsqrt.pop %v2135
    %v2144 = vmul.f32 %v2080, %v2136
    %v2145 = vmul.f32 %v2081, %v2137
    %v2146 = vmul.f32 %v2082, %v2138
    %v2147 = vmul.f32 %v2083, %v2139
    %v2148 = vmul.f32 %v2084, %v2140
    %v2149 = vmul.f32 %v2085, %v2141
    %v2150 = vmul.f32 %v2086, %v2142
    %v2151 = vmul.f32 %v2087, %v2143
    %v2152 = vpack.c.bf16 %v2145, %v2144
    %v2153 = vpack.c.bf16 %v2147, %v2146
    %v2154 = vpack.c.bf16 %v2149, %v2148
    %v2155 = vpack.c.bf16 %v2151, %v2150
    %v2156 = vlaneseq
    %v2157 = vshrl.u32 %v2156, 7
    %v2158 = vsub.s32 0, %v2157
    %v2159 = vrot.slane %v1783, %v2158
    %v2164 = vunpack.c.l.b16 %v1775
    %v2165 = vunpack.c.l.b16 %v1776
    %v2166 = vunpack.c.l.b16 %v1777
    %v2167 = vunpack.c.l.b16 %v1778
    %v2168 = vpack.c.b16 %v2165, %v2164
    %v2169 = vpack.c.b16 %v2167, %v2166
    %v2172 = vsel %vm2046, %v2152, 0
    %v2175 = vsel %vm2046, %v2153, 0
    %v2178 = vsel %vm2046, %v2154, 0
    %v2181 = vsel %vm2046, %v2155, 0
    %vm2183 = vcmask 1044480
    %v2184 = vsel %vm60, 4294967295, 65535
    %v2185 = vsel %vm2183, %v2184, 0
    %v2187 = vand.u32 %v2169, %v2185
    %2189 = vmatprep.subr.bf16.mxu0 0
    %2190 = vmatpush1.bf16.msra.mxu0 %v2168
    %2191 = vmatprep.subr.bf16.mxu0 0
    %2192 = vmatpush1.bf16.msra.mxu0 %v2187
    %2193 = vmatprep.subr.bf16.mxu0 0
    %2194 = vmatpush1.bf16.msra.mxu0 0
    %2195 = vmatprep.subr.bf16.mxu0 0
    %2196 = vmatpush1.bf16.msra.mxu0 0
    %2197 = vmatprep.subr.bf16.mxu0 0
    %2198 = vmatpush1.bf16.msra.mxu0 0
    %2199 = vmatprep.subr.bf16.mxu0 0
    %2200 = vmatpush1.bf16.msra.mxu0 0
    %2201 = vmatprep.subr.bf16.mxu0 0
    %2202 = vmatpush1.bf16.msra.mxu0 0
    %2203 = vmatprep.subr.bf16.mxu0 0
    %2204 = vmatpush1.bf16.msra.mxu0 0
    %2205 = vmatprep.subr.bf16.mxu0 0
    %2206 = vmatpush1.bf16.msra.mxu0 0
    %2207 = vmatprep.subr.bf16.mxu0 0
    %2208 = vmatpush1.bf16.msra.mxu0 0
    %2209 = vmatprep.subr.bf16.mxu0 0
    %2210 = vmatpush1.bf16.msra.mxu0 0
    %2211 = vmatprep.subr.bf16.mxu0 0
    %2212 = vmatpush1.bf16.msra.mxu0 0
    %2213 = vmatprep.subr.bf16.mxu0 0
    %2214 = vmatpush1.bf16.msra.mxu0 0
    %2215 = vmatprep.subr.bf16.mxu0 0
    %2216 = vmatpush1.bf16.msra.mxu0 0
    %2217 = vmatprep.subr.bf16.mxu0 0
    %2218 = vmatpush1.bf16.msra.mxu0 0
    %2219 = vmatprep.subr.bf16.mxu0 0
    %2220 = vmatpush1.bf16.msra.mxu0 0
    %2221 = vmatprep.mubr.bf16.mxu0 0
    %2222 = vmatmul.mubr.bf16.gmra.mrb[0].mxu0 %v2172
    %v2223 = vpop.f32.mrb[0].mxu0
    %v2224 = vadd.f32 %v2159, %v2223
    %v2225 = vpop.f32.mrb[0].mxu0
    %v2226 = vpop.f32.mrb[0].mxu0
    %v2227 = vadd.f32 %v2159, %v2226
    %v2228 = vpop.f32.mrb[0].mxu0
    %2229 = vmatprep.mubr.bf16.mxu0 0
    %2230 = vmatmul.mubr.bf16.gmra.mrb[0].mxu0 %v2175
    %v2231 = vpop.f32.mrb[0].mxu0
    %v2232 = vadd.f32 %v2159, %v2231
    %v2233 = vpop.f32.mrb[0].mxu0
    %v2234 = vpop.f32.mrb[0].mxu0
    %v2235 = vadd.f32 %v2159, %v2234
    %v2236 = vpop.f32.mrb[0].mxu0
    %2237 = vmatprep.mubr.bf16.mxu0 0
    %2238 = vmatmul.mubr.bf16.gmra.mrb[0].mxu0 %v2178
    %v2239 = vpop.f32.mrb[0].mxu0
    %v2240 = vadd.f32 %v2159, %v2239
    %v2241 = vpop.f32.mrb[0].mxu0
    %v2242 = vpop.f32.mrb[0].mxu0
    %v2243 = vadd.f32 %v2159, %v2242
    %v2244 = vpop.f32.mrb[0].mxu0
    %2245 = vmatprep.mubr.bf16.mxu0 0
    %2246 = vmatmul.mubr.bf16.gmra.mrb[0].mxu0 %v2181
    %v2247 = vpop.f32.mrb[0].mxu0
    %v2248 = vadd.f32 %v2159, %v2247
    %v2249 = vpop.f32.mrb[0].mxu0
    %v2250 = vpop.f32.mrb[0].mxu0
    %v2251 = vadd.f32 %v2159, %v2250
    %v2252 = vpop.f32.mrb[0].mxu0
    %2253 = vdwg.mxu0
    %v2254 = vmax.f32 %v2224, 0.0
    %v2255 = vmax.f32 %v2227, 0.0
    %v2256 = vmax.f32 %v2232, 0.0
    %v2257 = vmax.f32 %v2235, 0.0
    %v2258 = vmax.f32 %v2240, 0.0
    %v2259 = vmax.f32 %v2243, 0.0
    %v2260 = vmax.f32 %v2248, 0.0
    %v2261 = vmax.f32 %v2251, 0.0
    %v2262 = vpack.c.bf16 %v2255, %v2254
    %v2263 = vpack.c.bf16 %v2257, %v2256
    %v2264 = vpack.c.bf16 %v2259, %v2258
    %v2265 = vpack.c.bf16 %v2261, %v2260
    %v2266 = vlaneseq
    %v2267 = vshrl.u32 %v2266, 7
    %v2268 = vsub.s32 1, %v2267
    %v2269 = vrot.slane %v1783, %v2268
    %v2274 = vunpack.c.l.b16 %v1779
    %v2275 = vunpack.c.l.b16 %v1780
    %v2276 = vunpack.c.l.b16 %v1781
    %v2277 = vunpack.c.l.b16 %v1782
    %v2278 = vpack.c.b16 %v2275, %v2274
    %v2279 = vpack.c.b16 %v2277, %v2276
    %vm2282 = vcmask 261120
    %v2284 = vsel %vm2282, %v2262, 0
    %v2287 = vsel %vm2282, %v2263, 0
    %v2290 = vsel %vm2282, %v2264, 0
    %v2293 = vsel %vm2282, %v2265, 0
    %2295 = vmatprep.subr.bf16.mxu0 0
    %2296 = vmatpush1.bf16.msra.mxu0 %v2278
    %2297 = vmatprep.subr.bf16.mxu0 0
    %2298 = vmatpush1.bf16.msra.mxu0 %v2279
    %2299 = vmatprep.subr.bf16.mxu0 0
    %2300 = vmatpush1.bf16.msra.mxu0 0
    %2301 = vmatprep.subr.bf16.mxu0 0
    %2302 = vmatpush1.bf16.msra.mxu0 0
    %2303 = vmatprep.subr.bf16.mxu0 0
    %2304 = vmatpush1.bf16.msra.mxu0 0
    %2305 = vmatprep.subr.bf16.mxu0 0
    %2306 = vmatpush1.bf16.msra.mxu0 0
    %2307 = vmatprep.subr.bf16.mxu0 0
    %2308 = vmatpush1.bf16.msra.mxu0 0
    %2309 = vmatprep.subr.bf16.mxu0 0
    %2310 = vmatpush1.bf16.msra.mxu0 0
    %2311 = vmatprep.subr.bf16.mxu0 0
    %2312 = vmatpush1.bf16.msra.mxu0 0
    %2313 = vmatprep.subr.bf16.mxu0 0
    %2314 = vmatpush1.bf16.msra.mxu0 0
    %2315 = vmatprep.subr.bf16.mxu0 0
    %2316 = vmatpush1.bf16.msra.mxu0 0
    %2317 = vmatprep.subr.bf16.mxu0 0
    %2318 = vmatpush1.bf16.msra.mxu0 0
    %2319 = vmatprep.subr.bf16.mxu0 0
    %2320 = vmatpush1.bf16.msra.mxu0 0
    %2321 = vmatprep.subr.bf16.mxu0 0
    %2322 = vmatpush1.bf16.msra.mxu0 0
    %2323 = vmatprep.subr.bf16.mxu0 0
    %2324 = vmatpush1.bf16.msra.mxu0 0
    %2325 = vmatprep.subr.bf16.mxu0 0
    %2326 = vmatpush1.bf16.msra.mxu0 0
    %2327 = vmatprep.mubr.bf16.mxu0 0
    %2328 = vmatmul.mubr.bf16.gmra.mrb[0].mxu0 %v2284
    %v2329 = vpop.f32.mrb[0].mxu0
    %v2330 = vadd.f32 %v2269, %v2329
    %v2331 = vpop.f32.mrb[0].mxu0
    %v2332 = vpop.f32.mrb[0].mxu0
    %v2333 = vadd.f32 %v2269, %v2332
    %v2334 = vpop.f32.mrb[0].mxu0
    %2335 = vmatprep.mubr.bf16.mxu0 0
    %2336 = vmatmul.mubr.bf16.gmra.mrb[0].mxu0 %v2287
    %v2337 = vpop.f32.mrb[0].mxu0
    %v2338 = vadd.f32 %v2269, %v2337
    %v2339 = vpop.f32.mrb[0].mxu0
    %v2340 = vpop.f32.mrb[0].mxu0
    %v2341 = vadd.f32 %v2269, %v2340
    %v2342 = vpop.f32.mrb[0].mxu0
    %2343 = vmatprep.mubr.bf16.mxu0 0
    %2344 = vmatmul.mubr.bf16.gmra.mrb[0].mxu0 %v2290
    %v2345 = vpop.f32.mrb[0].mxu0
    %v2346 = vadd.f32 %v2269, %v2345
    %v2347 = vpop.f32.mrb[0].mxu0
    %v2348 = vpop.f32.mrb[0].mxu0
    %v2349 = vadd.f32 %v2269, %v2348
    %v2350 = vpop.f32.mrb[0].mxu0
    %2351 = vmatprep.mubr.bf16.mxu0 0
    %2352 = vmatmul.mubr.bf16.gmra.mrb[0].mxu0 %v2293
    %v2353 = vpop.f32.mrb[0].mxu0
    %v2354 = vadd.f32 %v2269, %v2353
    %v2355 = vpop.f32.mrb[0].mxu0
    %v2356 = vpop.f32.mrb[0].mxu0
    %v2357 = vadd.f32 %v2269, %v2356
    %v2358 = vpop.f32.mrb[0].mxu0
    %2359 = vdwg.mxu0
    %v2360 = vmul.f32 %v2330, %v2330
    %v2361 = vmul.f32 %v2333, %v2333
    %v2362 = vmul.f32 %v2338, %v2338
    %v2363 = vmul.f32 %v2341, %v2341
    %v2364 = vmul.f32 %v2346, %v2346
    %v2365 = vmul.f32 %v2349, %v2349
    %v2366 = vmul.f32 %v2354, %v2354
    %v2367 = vmul.f32 %v2357, %v2357
    %v2368 = vmul.f32 %v2330, %v2360
    %v2369 = vmul.f32 %v2333, %v2361
    %v2370 = vmul.f32 %v2338, %v2362
    %v2371 = vmul.f32 %v2341, %v2363
    %v2372 = vmul.f32 %v2346, %v2364
    %v2373 = vmul.f32 %v2349, %v2365
    %v2374 = vmul.f32 %v2354, %v2366
    %v2375 = vmul.f32 %v2357, %v2367
    %v2376 = vmul.f32 %v2368, 0.044715
    %v2377 = vmul.f32 %v2369, 0.044715
    %v2378 = vmul.f32 %v2370, 0.044715
    %v2379 = vmul.f32 %v2371, 0.044715
    %v2380 = vmul.f32 %v2372, 0.044715
    %v2381 = vmul.f32 %v2373, 0.044715
    %v2382 = vmul.f32 %v2374, 0.044715
    %v2383 = vmul.f32 %v2375, 0.044715
    %v2384 = vadd.f32 %v2330, %v2376
    %v2385 = vadd.f32 %v2333, %v2377
    %v2386 = vadd.f32 %v2338, %v2378
    %v2387 = vadd.f32 %v2341, %v2379
    %v2388 = vadd.f32 %v2346, %v2380
    %v2389 = vadd.f32 %v2349, %v2381
    %v2390 = vadd.f32 %v2354, %v2382
    %v2391 = vadd.f32 %v2357, %v2383
    %v2392 = vmul.f32 %v2384, 0.7978846
    %v2393 = vmul.f32 %v2385, 0.7978846
    %v2394 = vmul.f32 %v2386, 0.7978846
    %v2395 = vmul.f32 %v2387, 0.7978846
    %v2396 = vmul.f32 %v2388, 0.7978846
    %v2397 = vmul.f32 %v2389, 0.7978846
    %v2398 = vmul.f32 %v2390, 0.7978846
    %v2399 = vmul.f32 %v2391, 0.7978846
    %v2400 = vtanh.pop %v2392
    %v2401 = vtanh.pop %v2393
    %v2402 = vtanh.pop %v2394
    %v2403 = vtanh.pop %v2395
    %v2404 = vtanh.pop %v2396
    %v2405 = vtanh.pop %v2397
    %v2406 = vtanh.pop %v2398
    %v2407 = vtanh.pop %v2399
    %v2408 = vadd.f32 %v2400, 1.0
    %v2409 = vadd.f32 %v2401, 1.0
    %v2410 = vadd.f32 %v2402, 1.0
    %v2411 = vadd.f32 %v2403, 1.0
    %v2412 = vadd.f32 %v2404, 1.0
    %v2413 = vadd.f32 %v2405, 1.0
    %v2414 = vadd.f32 %v2406, 1.0
    %v2415 = vadd.f32 %v2407, 1.0
    %v2416 = vmul.f32 %v2408, 0.5
    %v2417 = vmul.f32 %v2409, 0.5
    %v2418 = vmul.f32 %v2410, 0.5
    %v2419 = vmul.f32 %v2411, 0.5
    %v2420 = vmul.f32 %v2412, 0.5
    %v2421 = vmul.f32 %v2413, 0.5
    %v2422 = vmul.f32 %v2414, 0.5
    %v2423 = vmul.f32 %v2415, 0.5
    %v2424 = vmul.f32 %v2330, %v2416
    %v2425 = vmul.f32 %v2333, %v2417
    %v2426 = vmul.f32 %v2338, %v2418
    %v2427 = vmul.f32 %v2341, %v2419
    %v2428 = vmul.f32 %v2346, %v2420
    %v2429 = vmul.f32 %v2349, %v2421
    %v2430 = vmul.f32 %v2354, %v2422
    %v2431 = vmul.f32 %v2357, %v2423
    %v2432 = vlaneseq
    %v2433 = vshrl.u32 %v2432, 7
    %v2434 = vsub.s32 2, %v2433
    %v2435 = vrot.slane %v1783, %v2434
    %v2436 = vmul.f32 %v2424, %v2435
    %v2437 = vmul.f32 %v2425, %v2435
    %v2438 = vmul.f32 %v2426, %v2435
    %v2439 = vmul.f32 %v2427, %v2435
    %v2440 = vmul.f32 %v2428, %v2435
    %v2441 = vmul.f32 %v2429, %v2435
    %v2442 = vmul.f32 %v2430, %v2435
    %v2443 = vmul.f32 %v2431, %v2435
    %v2444 = vsel %vm2282, %v2436, 0.0
    %2445 = vadd.xlane.f32.xlu0 %v2444
    %v2446 = vpop.xlane.xlu0 %2445
    %v2447 = vsel %vm2282, %v2437, 0.0
    %2448 = vadd.xlane.f32.xlu0 %v2447
    %v2449 = vpop.xlane.xlu0 %2448
    %v2450 = vsel %vm2282, %v2438, 0.0
    %2451 = vadd.xlane.f32.xlu0 %v2450
    %v2452 = vpop.xlane.xlu0 %2451
    %v2453 = vsel %vm2282, %v2439, 0.0
    %2454 = vadd.xlane.f32.xlu0 %v2453
    %v2455 = vpop.xlane.xlu0 %2454
    %v2456 = vsel %vm2282, %v2440, 0.0
    %2457 = vadd.xlane.f32.xlu0 %v2456
    %v2458 = vpop.xlane.xlu0 %2457
    %v2459 = vsel %vm2282, %v2441, 0.0
    %2460 = vadd.xlane.f32.xlu0 %v2459
    %v2461 = vpop.xlane.xlu0 %2460
    %v2462 = vsel %vm2282, %v2442, 0.0
    %2463 = vadd.xlane.f32.xlu0 %v2462
    %v2464 = vpop.xlane.xlu0 %2463
    %v2465 = vsel %vm2282, %v2443, 0.0
    %2466 = vadd.xlane.f32.xlu0 %v2465
    %v2467 = vpop.xlane.xlu0 %2466
    %v2469 = vrot.slane %v1783, 3
    %s2470 = vtos %v2469
    %v2471 = vstv %s2470
    %v2473 = vadd.f32 %v2446, %v2471
    %v2474 = vadd.f32 %v2449, %v2471
    %v2475 = vadd.f32 %v2452, %v2471
    %v2476 = vadd.f32 %v2455, %v2471
    %v2477 = vadd.f32 %v2458, %v2471
    %v2478 = vadd.f32 %v2461, %v2471
    %v2479 = vadd.f32 %v2464, %v2471
    %v2480 = vadd.f32 %v2467, %v2471
    %v2489 = vlaneseq
    %v2490 = vshrl.u32 %v2489, 7
    %v2491 = vsub.s32 %v327, %v2490
    %v2492 = vrot.slane %v2473, %v2491
    %v2493 = vlaneseq
    %v2494 = vshrl.u32 %v2493, 7
    %v2495 = vsub.s32 %v327, %v2494
    %v2496 = vrot.slane %v2474, %v2495
    %v2497 = vlaneseq
    %v2498 = vshrl.u32 %v2497, 7
    %v2499 = vsub.s32 %v327, %v2498
    %v2500 = vrot.slane %v2475, %v2499
    %v2501 = vlaneseq
    %v2502 = vshrl.u32 %v2501, 7
    %v2503 = vsub.s32 %v327, %v2502
    %v2504 = vrot.slane %v2476, %v2503
    %v2505 = vlaneseq
    %v2506 = vshrl.u32 %v2505, 7
    %v2507 = vsub.s32 %v327, %v2506
    %v2508 = vrot.slane %v2477, %v2507
    %v2509 = vlaneseq
    %v2510 = vshrl.u32 %v2509, 7
    %v2511 = vsub.s32 %v327, %v2510
    %v2512 = vrot.slane %v2478, %v2511
    %v2513 = vlaneseq
    %v2514 = vshrl.u32 %v2513, 7
    %v2515 = vsub.s32 %v327, %v2514
    %v2516 = vrot.slane %v2479, %v2515
    %v2517 = vlaneseq
    %v2518 = vshrl.u32 %v2517, 7
    %v2519 = vsub.s32 %v327, %v2518
    %v2520 = vrot.slane %v2480, %v2519
    %v2521 = vsel %vm360, %v2496, %v2492
    %v2522 = vsel %vm362, %v2500, %v2521
    %v2523 = vsel %vm364, %v2504, %v2522
    %v2524 = vsel %vm366, %v2508, %v2523
    %v2525 = vsel %vm368, %v2512, %v2524
    %v2526 = vsel %vm370, %v2516, %v2525
    %v2527 = vsel %vm372, %v2520, %v2526
    %2529 = vst.msk [vmem:[#allocation3] sm:$0xff] %vm56, %v2527
    // Predicated region
    $region58: #{graph_llm_forward.1} parent=1 // pred_check
      _
    $region59: #{graph_llm_forward.1} parent=1 // pred_check_branch
      %2531 = sbr.rel (0) target = $region61
    $region60: #{graph_llm_forward.1} parent=1 // pred_region
      %s2533 = ssub.s32 128, 128
      %2534 = vsyncadd [#allocation4], %s2533
      %s2536 = sshll.u32 [#allocation3], 4
      %s2537 = int_to_ptr.vmem [resolvable:$true] %s2536
      %2539 = dma.vmem_to_hbm [thread:$0]  %s2537, 128, %s14, [#allocation4]
    $region61: #{graph_llm_forward.1} parent=1 // pred_fallthru
      _
    // Predicated region
    $region62: #{graph_llm_forward.1} parent=1 // pred_check
      _
    $region63: #{graph_llm_forward.1} parent=1 // pred_check_branch
      %2541 = sbr.rel (0) target = $region65
    $region64: #{graph_llm_forward.1} parent=1 // pred_region
      %2542 = dma.done [#allocation4], 128
    $region65: #{graph_llm_forward.1} parent=1 // pred_fallthru
      _
    %2543 = vsyncpa [#allocation4], 1

</llo_original>
